<compile_context>
chip_gen: v6e
topology: v6e:2x2x1
jax: 0.10.0
libtpu: 0.0.40
codegen_flags: <defaults>
</compile_context>

<pallas_src>
import functools

import jax
import jax.numpy as jnp
from jax.experimental import pallas as pl
from jax.experimental.pallas import tpu as pltpu


def _output_layer_kernel(x_ref, xin_ref, ecm_ref, keep_ref,
                         sha_ref, sca_ref, shb_ref, scb_ref,
                         w1_ref, b1_ref, w2a_ref, b2a_ref, w2b_ref, b2b_ref,
                         atom_ref, bond_ref, *, n, c_bond, d_total, eps):
    # ---- xedecoder MLP: Linear(H,H) -> GELU(tanh) -> Linear(H, D) ----
    # bf16 MXU operands, f32 accumulation.  The bond head's weight/bias (and the
    # shift/scale below) arrive column-permuted to channel-major, so xb is born
    # channel-major and no in-kernel layout conversion is needed.
    x = x_ref[0].astype(jnp.bfloat16)                                        # (N, H)
    h = jnp.dot(x, w1_ref[...], preferred_element_type=jnp.float32) + b1_ref[...]
    h = jax.nn.gelu(h, approximate=True).astype(jnp.bfloat16)
    xa = jnp.dot(h, w2a_ref[...], preferred_element_type=jnp.float32) + b2a_ref[...]   # (N, A)
    xb = jnp.dot(h, w2b_ref[...], preferred_element_type=jnp.float32) + b2b_ref[...]   # (N, C*N)

    # ---- single-pass LayerNorm stats over the concatenated D = A + N*C ----
    inv_d = 1.0 / d_total
    s1 = jnp.sum(xa, axis=-1, keepdims=True) + jnp.sum(xb, axis=-1, keepdims=True)
    s2 = jnp.sum(xa * xa, axis=-1, keepdims=True) + jnp.sum(xb * xb, axis=-1, keepdims=True)
    mean = s1 * inv_d                                                         # (N, 1)
    var = s2 * inv_d - mean * mean
    inv_std = jax.lax.rsqrt(var + eps)

    # ---- atom head: modulate + residual, single store ----
    atom = xin_ref[0] + (xa - mean) * inv_std * (1.0 + sca_ref[0]) + sha_ref[0]
    atom_ref[0] = atom.astype(atom_ref.dtype)

    # ---- bond head: ONE fused channel-major f32 slab (modulate + residual),
    #      then per-channel mask / zero-diag / symmetrize into the output block.
    #      keep_ref holds 0.5*keep; keep is symmetric with zero diagonal, so
    #      keep_half*(v + v^T) == 0.5*((keep*v) + (keep*v)^T)  (reference order).
    v = (xb - mean) * inv_std * (1.0 + scb_ref[0]) + shb_ref[0] + ecm_ref[0]  # (N, C*N)
    kh = keep_ref[0]                                                          # (N, N)
    for k in range(c_bond):                                                   # small, unrolled
        vk = v[:, k * n:(k + 1) * n]                                          # (N, N) channel k
        bond_ref[0, :, k * n:(k + 1) * n] = (kh * (vk + vk.T)).astype(bond_ref.dtype)


def output_layer_forward(x, x_in, e_in, c, t, node_mask, params, atom_type, bond_type):
    del t  # unused in the reference forward
    B, N, H = x.shape
    A, C = atom_type, bond_type
    NC = N * C
    D = A + NC
    dtype = x.dtype

    # ---- adaLN modulation hoisted to XLA (M=1 matmuls don't belong in-kernel) ----
    hc = c @ params["wc1"] + params["bc1"][0]
    hc = hc * jax.nn.sigmoid(hc)                                     # SiLU
    cm = hc @ params["wc2"] + params["bc2"][0]                       # (B, 2D)
    shift, scale = cm[:, :D], cm[:, D:]

    # ---- channel-major column permutation for the bond head ----
    # channel-major position p = k*N + j  <->  interleaved bond column j*C + k.
    p_idx = jnp.arange(NC)
    idx = (p_idx % N) * C + p_idx // N
    w2a = params["w2"][:, :A]
    b2a = params["b2"][:, :A]
    w2b = params["w2"][:, A:][:, idx]
    b2b = params["b2"][:, A:][:, idx]
    shift_a = shift[:, :A].reshape(B, 1, A)
    scale_a = scale[:, :A].reshape(B, 1, A)
    shift_b = shift[:, A:][:, idx].reshape(B, 1, NC)
    scale_b = scale[:, A:][:, idx].reshape(B, 1, NC)

    # bf16 MXU operands (f32 accumulation in-kernel); halves weight VMEM residency.
    w1 = params["w1"].astype(jnp.bfloat16)
    w2a = w2a.astype(jnp.bfloat16)
    w2b = w2b.astype(jnp.bfloat16)

    # ---- e_in to channel-major with ONE XLA pass: (B,N,N,C) -> (B,N,C*N) ----
    e_cm = jnp.swapaxes(e_in, 2, 3).reshape(B, N, NC)

    # ---- keep_half[i,j] = 0.5 unless (both nodes absent) or i == j (then 0).
    # keep is symmetric with zero diagonal (invariant the kernel relies on).
    inv = 1.0 - node_mask.astype(jnp.float32)
    keep = 1.0 - inv[:, :, None] * inv[:, None, :]
    keep = keep * (1.0 - jnp.eye(N, dtype=jnp.float32))[None]
    keep_half = 0.5 * keep                                           # (B, N, N)

    kernel = functools.partial(_output_layer_kernel, n=N, c_bond=C,
                               d_total=float(D), eps=1e-5)

    itemsize = jnp.dtype(dtype).itemsize
    cost = pl.CostEstimate(
        flops=2 * B * N * H * (H + D),
        transcendentals=B * N * H,                                   # GELU tanh
        bytes_accessed=itemsize * (x.size + x_in.size + 2 * B * N * NC + B * N * A)
                       + 4 * (B * N * N + 2 * B * A + 2 * B * NC)
                       + 2 * (H * H + H * D) + 4 * (H + D))

    atom_out, bond_cm = pl.pallas_call(
        kernel,
        out_shape=(jax.ShapeDtypeStruct((B, N, A), dtype),
                   jax.ShapeDtypeStruct((B, N, NC), dtype)),
        grid_spec=pltpu.PrefetchScalarGridSpec(
            num_scalar_prefetch=0,
            grid=(B,),
            in_specs=[
                pl.BlockSpec((1, N, H), lambda b: (b, 0, 0)),    # x
                pl.BlockSpec((1, N, A), lambda b: (b, 0, 0)),    # x_in
                pl.BlockSpec((1, N, NC), lambda b: (b, 0, 0)),   # e_in (channel-major)
                pl.BlockSpec((1, N, N), lambda b: (b, 0, 0)),    # 0.5*keep mask
                pl.BlockSpec((1, 1, A), lambda b: (b, 0, 0)),    # shift_atom
                pl.BlockSpec((1, 1, A), lambda b: (b, 0, 0)),    # scale_atom
                pl.BlockSpec((1, 1, NC), lambda b: (b, 0, 0)),   # shift_bond (cm)
                pl.BlockSpec((1, 1, NC), lambda b: (b, 0, 0)),   # scale_bond (cm)
                pl.BlockSpec((H, H), lambda b: (0, 0)),          # w1  (bf16)
                pl.BlockSpec((1, H), lambda b: (0, 0)),          # b1
                pl.BlockSpec((H, A), lambda b: (0, 0)),          # w2_atom (bf16)
                pl.BlockSpec((1, A), lambda b: (0, 0)),          # b2_atom
                pl.BlockSpec((H, NC), lambda b: (0, 0)),         # w2_bond (bf16, cm)
                pl.BlockSpec((1, NC), lambda b: (0, 0)),         # b2_bond (cm)
            ],
            out_specs=[
                pl.BlockSpec((1, N, A), lambda b: (b, 0, 0)),    # atom
                pl.BlockSpec((1, N, NC), lambda b: (b, 0, 0)),   # bond, lane-dense cm slab
            ]),
        compiler_params=pltpu.CompilerParams(
            dimension_semantics=("parallel",)),
        cost_estimate=cost,
    )(x, x_in, e_cm, keep_half, shift_a, scale_a, shift_b, scale_b,
      w1, params["b1"], w2a, b2a, w2b, b2b)

    # channel-major -> (B, N, N, C) with ONE XLA pass
    bond_out = jnp.swapaxes(bond_cm.reshape(B, N, C, N), 2, 3)
    return atom_out, bond_out


def reference_forward(x, x_in, e_in, c, node_mask, p, atom_type, bond_type):
    B, N, _ = x.shape
    h = jax.nn.gelu(x @ p["w1"] + p["b1"][0], approximate=True)
    x_all = h @ p["w2"] + p["b2"][0]
    hc = c @ p["wc1"] + p["bc1"][0]
    hc = hc * jax.nn.sigmoid(hc)
    cm = hc @ p["wc2"] + p["bc2"][0]
    D = x_all.shape[-1]
    shift, scale = cm[:, :D], cm[:, D:]
    mean = x_all.mean(-1, keepdims=True)
    var = ((x_all - mean) ** 2).mean(-1, keepdims=True)
    xn = (x_all - mean) / jnp.sqrt(var + 1e-5)
    xmod = xn * (1.0 + scale[:, None, :]) + shift[:, None, :]
    atom = x_in + xmod[..., :atom_type]
    bond = xmod[..., atom_type:].reshape(B, N, N, bond_type) + e_in
    inv = ~node_mask
    edge_mask = inv[:, :, None] & inv[:, None, :]
    diag = jnp.eye(N, dtype=bool)[None]
    bond = jnp.where(edge_mask[..., None], 0.0, bond)
    bond = jnp.where(diag[..., None], 0.0, bond)
    bond = 0.5 * (bond + jnp.swapaxes(bond, 1, 2))
    return atom, bond


if __name__ == "__main__":
    B, N, H = 2, 8, 32          # N == max_n_nodes
    atom_type, bond_type = 8, 4
    D = atom_type + N * bond_type

    key = jax.random.PRNGKey(0)
    ks = jax.random.split(key, 12)
    init = lambda k, s: 0.1 * jax.random.normal(k, s, jnp.float32)

    params = dict(
        w1=init(ks[0], (H, H)),   b1=init(ks[1], (1, H)),
        w2=init(ks[2], (H, D)),   b2=init(ks[3], (1, D)),
        wc1=init(ks[4], (H, H)),  bc1=init(ks[5], (1, H)),
        wc2=init(ks[6], (H, 2 * D)), bc2=init(ks[7], (1, 2 * D)),
    )

    x = jax.random.normal(ks[8], (B, N, H), jnp.float32)
    x_in = jax.random.normal(ks[9], (B, N, atom_type), jnp.float32)
    e_in = jax.random.normal(ks[10], (B, N, N, bond_type), jnp.float32)
    c = jax.random.normal(ks[11], (B, H), jnp.float32)
    node_mask = jnp.array([[True] * 6 + [False] * 2,
                           [True] * 8], dtype=bool)
    t = jnp.zeros((B,), jnp.float32)  # unused, matches torch signature

    atom_out, bond_out = output_layer_forward(
        x, x_in, e_in, c, t, node_mask, params, atom_type, bond_type)
    atom_out = jax.block_until_ready(atom_out)
    bond_out = jax.block_until_ready(bond_out)

    atom_ref, bond_ref = reference_forward(
        x, x_in, e_in, c, node_mask, params, atom_type, bond_type)

    assert atom_out.shape == (B, N, atom_type)
    assert bond_out.shape == (B, N, N, bond_type)
    # Kernel uses bf16 MXU operands (f32 accumulation + f32 LayerNorm/modulate);
    # reference is all-f32, so tolerance is sized for bf16 operand rounding.
    assert jnp.allclose(atom_out, atom_ref, atol=7.5e-2, rtol=5e-2), float(
        jnp.max(jnp.abs(atom_out - atom_ref)))
    assert jnp.allclose(bond_out, bond_ref, atol=7.5e-2, rtol=5e-2), float(
        jnp.max(jnp.abs(bond_out - bond_ref)))
    print("KERNEL_OK")
</pallas_src>

<mosaic_0001>
module attributes {stable_mosaic.version = 11 : i64} {
  func.func @_output_layer_kernel(%arg0: i32, %arg1: memref<1x8x32xf32, #tpu.memory_space<vmem>>, %arg2: memref<1x8x8xf32, #tpu.memory_space<vmem>>, %arg3: memref<1x8x32xf32, #tpu.memory_space<vmem>>, %arg4: memref<1x8x8xf32, #tpu.memory_space<vmem>>, %arg5: memref<1x1x8xf32, #tpu.memory_space<vmem>>, %arg6: memref<1x1x8xf32, #tpu.memory_space<vmem>>, %arg7: memref<1x1x32xf32, #tpu.memory_space<vmem>>, %arg8: memref<1x1x32xf32, #tpu.memory_space<vmem>>, %arg9: memref<32x32xbf16, #tpu.memory_space<vmem>>, %arg10: memref<1x32xf32, #tpu.memory_space<vmem>>, %arg11: memref<32x8xbf16, #tpu.memory_space<vmem>>, %arg12: memref<1x8xf32, #tpu.memory_space<vmem>>, %arg13: memref<32x32xbf16, #tpu.memory_space<vmem>>, %arg14: memref<1x32xf32, #tpu.memory_space<vmem>>, %arg15: memref<1x8x8xf32, #tpu.memory_space<vmem>>, %arg16: memref<1x8x32xf32, #tpu.memory_space<vmem>>) attributes {dimension_semantics = [#tpu.dimension_semantics<parallel>], iteration_bounds = array<i64: 2>, scalar_prefetch = 0 : i64, scratch_operands = 0 : i64, tpu.core_type = #tpu.core_type<tc>, window_params = [{transform_indices = @transform_0, window_bounds = array<i64: 1, 8, 32>}, {transform_indices = @transform_1, window_bounds = array<i64: 1, 8, 8>}, {transform_indices = @transform_2, window_bounds = array<i64: 1, 8, 32>}, {transform_indices = @transform_3, window_bounds = array<i64: 1, 8, 8>}, {transform_indices = @transform_4, window_bounds = array<i64: 1, 1, 8>}, {transform_indices = @transform_5, window_bounds = array<i64: 1, 1, 8>}, {transform_indices = @transform_6, window_bounds = array<i64: 1, 1, 32>}, {transform_indices = @transform_7, window_bounds = array<i64: 1, 1, 32>}, {pipeline_mode = #tpu.pipeline_mode<synchronous>, transform_indices = @transform_8, window_bounds = array<i64: 32, 32>}, {pipeline_mode = #tpu.pipeline_mode<synchronous>, transform_indices = @transform_9, window_bounds = array<i64: 1, 32>}, {pipeline_mode = #tpu.pipeline_mode<synchronous>, transform_indices = @transform_10, window_bounds = array<i64: 32, 8>}, {pipeline_mode = #tpu.pipeline_mode<synchronous>, transform_indices = @transform_11, window_bounds = array<i64: 1, 8>}, {pipeline_mode = #tpu.pipeline_mode<synchronous>, transform_indices = @transform_12, window_bounds = array<i64: 32, 32>}, {pipeline_mode = #tpu.pipeline_mode<synchronous>, transform_indices = @transform_13, window_bounds = array<i64: 1, 32>}, {transform_indices = @transform_14, window_bounds = array<i64: 1, 8, 8>}, {transform_indices = @transform_15, window_bounds = array<i64: 1, 8, 32>}]} {
    %c0 = arith.constant 0 : index
    %c0_0 = arith.constant 0 : index
    %c0_1 = arith.constant 0 : index
    %0 = vector.load %arg1[%c0, %c0_0, %c0_1] : memref<1x8x32xf32, #tpu.memory_space<vmem>>, vector<1x8x32xf32>
    %1 = vector.shape_cast %0 : vector<1x8x32xf32> to vector<8x32xf32>
    %2 = arith.truncf %1 : vector<8x32xf32> to vector<8x32xbf16>
    %c0_2 = arith.constant 0 : index
    %c0_3 = arith.constant 0 : index
    %3 = vector.load %arg9[%c0_2, %c0_3] : memref<32x32xbf16, #tpu.memory_space<vmem>>, vector<32x32xbf16>
    %cst = arith.constant dense<0.000000e+00> : vector<8x32xf32>
    %4 = tpu.matmul %2, %3, %cst {dimension_numbers = #tpu.dot_dimension_numbers<[1], [0], [0], [1], [0, 0, 1, 1], [], []>} : vector<8x32xbf16>, vector<32x32xbf16>, vector<8x32xf32> -> vector<8x32xf32>
    %c0_4 = arith.constant 0 : index
    %c0_5 = arith.constant 0 : index
    %5 = vector.load %arg10[%c0_4, %c0_5] : memref<1x32xf32, #tpu.memory_space<vmem>>, vector<1x32xf32>
    %6 = vector.broadcast %5 : vector<1x32xf32> to vector<8x32xf32>
    %7 = arith.addf %4, %6 : vector<8x32xf32>
    %8 = arith.mulf %7, %7 : vector<8x32xf32>
    %9 = arith.mulf %7, %8 : vector<8x32xf32>
    %cst_6 = arith.constant 4.471500e-02 : f32
    %10 = vector.broadcast %cst_6 : f32 to vector<8x32xf32>
    %11 = arith.mulf %10, %9 : vector<8x32xf32>
    %12 = arith.addf %7, %11 : vector<8x32xf32>
    %cst_7 = arith.constant 0.797884583 : f32
    %13 = vector.broadcast %cst_7 : f32 to vector<8x32xf32>
    %14 = arith.mulf %13, %12 : vector<8x32xf32>
    %15 = math.tanh %14 : vector<8x32xf32>
    %cst_8 = arith.constant 1.000000e+00 : f32
    %16 = vector.broadcast %cst_8 : f32 to vector<8x32xf32>
    %17 = arith.addf %16, %15 : vector<8x32xf32>
    %cst_9 = arith.constant 5.000000e-01 : f32
    %18 = vector.broadcast %cst_9 : f32 to vector<8x32xf32>
    %19 = arith.mulf %18, %17 : vector<8x32xf32>
    %20 = arith.mulf %7, %19 : vector<8x32xf32>
    %21 = arith.truncf %20 : vector<8x32xf32> to vector<8x32xbf16>
    %c0_10 = arith.constant 0 : index
    %c0_11 = arith.constant 0 : index
    %22 = vector.load %arg11[%c0_10, %c0_11] : memref<32x8xbf16, #tpu.memory_space<vmem>>, vector<32x8xbf16>
    %cst_12 = arith.constant dense<0.000000e+00> : vector<8x8xf32>
    %23 = tpu.matmul %21, %22, %cst_12 {dimension_numbers = #tpu.dot_dimension_numbers<[1], [0], [0], [1], [0, 0, 1, 1], [], []>} : vector<8x32xbf16>, vector<32x8xbf16>, vector<8x8xf32> -> vector<8x8xf32>
    %c0_13 = arith.constant 0 : index
    %c0_14 = arith.constant 0 : index
    %24 = vector.load %arg12[%c0_13, %c0_14] : memref<1x8xf32, #tpu.memory_space<vmem>>, vector<1x8xf32>
    %25 = vector.broadcast %24 : vector<1x8xf32> to vector<8x8xf32>
    %26 = arith.addf %23, %25 : vector<8x8xf32>
    %c0_15 = arith.constant 0 : index
    %c0_16 = arith.constant 0 : index
    %27 = vector.load %arg13[%c0_15, %c0_16] : memref<32x32xbf16, #tpu.memory_space<vmem>>, vector<32x32xbf16>
    %cst_17 = arith.constant dense<0.000000e+00> : vector<8x32xf32>
    %28 = tpu.matmul %21, %27, %cst_17 {dimension_numbers = #tpu.dot_dimension_numbers<[1], [0], [0], [1], [0, 0, 1, 1], [], []>} : vector<8x32xbf16>, vector<32x32xbf16>, vector<8x32xf32> -> vector<8x32xf32>
    %c0_18 = arith.constant 0 : index
    %c0_19 = arith.constant 0 : index
    %29 = vector.load %arg14[%c0_18, %c0_19] : memref<1x32xf32, #tpu.memory_space<vmem>>, vector<1x32xf32>
    %30 = vector.broadcast %29 : vector<1x32xf32> to vector<8x32xf32>
    %31 = arith.addf %28, %30 : vector<8x32xf32>
    %cst_20 = arith.constant dense<0.000000e+00> : vector<8xf32>
    %32 = vector.multi_reduction <add>, %26, %cst_20 [1] : vector<8x8xf32> to vector<8xf32>
    %33 = vector.shape_cast %32 : vector<8xf32> to vector<8x1xf32>
    %cst_21 = arith.constant dense<0.000000e+00> : vector<8xf32>
    %34 = vector.multi_reduction <add>, %31, %cst_21 [1] : vector<8x32xf32> to vector<8xf32>
    %35 = vector.shape_cast %34 : vector<8xf32> to vector<8x1xf32>
    %36 = arith.addf %33, %35 : vector<8x1xf32>
    %37 = arith.mulf %26, %26 : vector<8x8xf32>
    %cst_22 = arith.constant dense<0.000000e+00> : vector<8xf32>
    %38 = vector.multi_reduction <add>, %37, %cst_22 [1] : vector<8x8xf32> to vector<8xf32>
    %39 = vector.shape_cast %38 : vector<8xf32> to vector<8x1xf32>
    %40 = arith.mulf %31, %31 : vector<8x32xf32>
    %cst_23 = arith.constant dense<0.000000e+00> : vector<8xf32>
    %41 = vector.multi_reduction <add>, %40, %cst_23 [1] : vector<8x32xf32> to vector<8xf32>
    %42 = vector.shape_cast %41 : vector<8xf32> to vector<8x1xf32>
    %43 = arith.addf %39, %42 : vector<8x1xf32>
    %cst_24 = arith.constant 2.500000e-02 : f32
    %44 = vector.broadcast %cst_24 : f32 to vector<8x1xf32>
    %45 = arith.mulf %36, %44 : vector<8x1xf32>
    %cst_25 = arith.constant 2.500000e-02 : f32
    %46 = vector.broadcast %cst_25 : f32 to vector<8x1xf32>
    %47 = arith.mulf %43, %46 : vector<8x1xf32>
    %48 = arith.mulf %45, %45 : vector<8x1xf32>
    %49 = arith.subf %47, %48 : vector<8x1xf32>
    %cst_26 = arith.constant 9.99999974E-6 : f32
    %50 = vector.broadcast %cst_26 : f32 to vector<8x1xf32>
    %51 = arith.addf %49, %50 : vector<8x1xf32>
    %52 = math.rsqrt %51 : vector<8x1xf32>
    %c0_27 = arith.constant 0 : index
    %c0_28 = arith.constant 0 : index
    %c0_29 = arith.constant 0 : index
    %53 = vector.load %arg2[%c0_27, %c0_28, %c0_29] : memref<1x8x8xf32, #tpu.memory_space<vmem>>, vector<1x8x8xf32>
    %54 = vector.shape_cast %53 : vector<1x8x8xf32> to vector<8x8xf32>
    %55 = vector.broadcast %45 : vector<8x1xf32> to vector<8x8xf32>
    %56 = arith.subf %26, %55 : vector<8x8xf32>
    %57 = vector.broadcast %52 : vector<8x1xf32> to vector<8x8xf32>
    %58 = arith.mulf %56, %57 : vector<8x8xf32>
    %c0_30 = arith.constant 0 : index
    %c0_31 = arith.constant 0 : index
    %c0_32 = arith.constant 0 : index
    %59 = vector.load %arg6[%c0_30, %c0_31, %c0_32] : memref<1x1x8xf32, #tpu.memory_space<vmem>>, vector<1x1x8xf32>
    %60 = vector.shape_cast %59 : vector<1x1x8xf32> to vector<1x8xf32>
    %cst_33 = arith.constant 1.000000e+00 : f32
    %61 = vector.broadcast %cst_33 : f32 to vector<1x8xf32>
    %62 = arith.addf %61, %60 : vector<1x8xf32>
    %63 = vector.broadcast %62 : vector<1x8xf32> to vector<8x8xf32>
    %64 = arith.mulf %58, %63 : vector<8x8xf32>
    %65 = arith.addf %54, %64 : vector<8x8xf32>
    %c0_34 = arith.constant 0 : index
    %c0_35 = arith.constant 0 : index
    %c0_36 = arith.constant 0 : index
    %66 = vector.load %arg5[%c0_34, %c0_35, %c0_36] : memref<1x1x8xf32, #tpu.memory_space<vmem>>, vector<1x1x8xf32>
    %67 = vector.shape_cast %66 : vector<1x1x8xf32> to vector<1x8xf32>
    %68 = vector.broadcast %67 : vector<1x8xf32> to vector<8x8xf32>
    %69 = arith.addf %65, %68 : vector<8x8xf32>
    %c0_37 = arith.constant 0 : index
    %c0_38 = arith.constant 0 : index
    %c0_39 = arith.constant 0 : index
    %70 = vector.load %arg15[%c0_37, %c0_38, %c0_39] : memref<1x8x8xf32, #tpu.memory_space<vmem>>, vector<1x8x8xf32>
    %71 = vector.shape_cast %70 : vector<1x8x8xf32> to vector<8x8xf32>
    %72 = vector.shape_cast %69 : vector<8x8xf32> to vector<1x8x8xf32>
    tpu.vector_store %arg15[%c0_37, %c0_38, %c0_39], %72 {strides = array<i32>} : memref<1x8x8xf32, #tpu.memory_space<vmem>>, vector<1x8x8xf32>,
    %73 = vector.broadcast %45 : vector<8x1xf32> to vector<8x32xf32>
    %74 = arith.subf %31, %73 : vector<8x32xf32>
    %75 = vector.broadcast %52 : vector<8x1xf32> to vector<8x32xf32>
    %76 = arith.mulf %74, %75 : vector<8x32xf32>
    %c0_40 = arith.constant 0 : index
    %c0_41 = arith.constant 0 : index
    %c0_42 = arith.constant 0 : index
    %77 = vector.load %arg8[%c0_40, %c0_41, %c0_42] : memref<1x1x32xf32, #tpu.memory_space<vmem>>, vector<1x1x32xf32>
    %78 = vector.shape_cast %77 : vector<1x1x32xf32> to vector<1x32xf32>
    %cst_43 = arith.constant 1.000000e+00 : f32
    %79 = vector.broadcast %cst_43 : f32 to vector<1x32xf32>
    %80 = arith.addf %79, %78 : vector<1x32xf32>
    %81 = vector.broadcast %80 : vector<1x32xf32> to vector<8x32xf32>
    %82 = arith.mulf %76, %81 : vector<8x32xf32>
    %c0_44 = arith.constant 0 : index
    %c0_45 = arith.constant 0 : index
    %c0_46 = arith.constant 0 : index
    %83 = vector.load %arg7[%c0_44, %c0_45, %c0_46] : memref<1x1x32xf32, #tpu.memory_space<vmem>>, vector<1x1x32xf32>
    %84 = vector.shape_cast %83 : vector<1x1x32xf32> to vector<1x32xf32>
    %85 = vector.broadcast %84 : vector<1x32xf32> to vector<8x32xf32>
    %86 = arith.addf %82, %85 : vector<8x32xf32>
    %c0_47 = arith.constant 0 : index
    %c0_48 = arith.constant 0 : index
    %c0_49 = arith.constant 0 : index
    %87 = vector.load %arg3[%c0_47, %c0_48, %c0_49] : memref<1x8x32xf32, #tpu.memory_space<vmem>>, vector<1x8x32xf32>
    %88 = vector.shape_cast %87 : vector<1x8x32xf32> to vector<8x32xf32>
    %89 = arith.addf %86, %88 : vector<8x32xf32>
    %c0_50 = arith.constant 0 : index
    %c0_51 = arith.constant 0 : index
    %c0_52 = arith.constant 0 : index
    %90 = vector.load %arg4[%c0_50, %c0_51, %c0_52] : memref<1x8x8xf32, #tpu.memory_space<vmem>>, vector<1x8x8xf32>
    %91 = vector.shape_cast %90 : vector<1x8x8xf32> to vector<8x8xf32>
    %92 = vector.extract_strided_slice %89 {offsets = [0, 0], sizes = [8, 8], strides = [1, 1]} : vector<8x32xf32> to vector<8x8xf32>
    %93 = tpu.transpose %92, [1, 0] : vector<8x8xf32> -> vector<8x8xf32>
    %94 = arith.addf %92, %93 : vector<8x8xf32>
    %95 = arith.mulf %91, %94 : vector<8x8xf32>
    %c0_53 = arith.constant 0 : index
    %c0_54 = arith.constant 0 : index
    %c0_55 = arith.constant 0 : index
    %96 = vector.load %arg16[%c0_53, %c0_54, %c0_55] : memref<1x8x32xf32, #tpu.memory_space<vmem>>, vector<1x8x8xf32>
    %97 = vector.shape_cast %96 : vector<1x8x8xf32> to vector<8x8xf32>
    %98 = vector.shape_cast %95 : vector<8x8xf32> to vector<1x8x8xf32>
    tpu.vector_store %arg16[%c0_53, %c0_54, %c0_55], %98 {strides = array<i32>} : memref<1x8x32xf32, #tpu.memory_space<vmem>>, vector<1x8x8xf32>,
    %99 = vector.extract_strided_slice %89 {offsets = [0, 8], sizes = [8, 8], strides = [1, 1]} : vector<8x32xf32> to vector<8x8xf32>
    %100 = tpu.transpose %99, [1, 0] : vector<8x8xf32> -> vector<8x8xf32>
    %101 = arith.addf %99, %100 : vector<8x8xf32>
    %102 = arith.mulf %91, %101 : vector<8x8xf32>
    %c0_56 = arith.constant 0 : index
    %c0_57 = arith.constant 0 : index
    %c8 = arith.constant 8 : index
    %103 = vector.load %arg16[%c0_56, %c0_57, %c8] : memref<1x8x32xf32, #tpu.memory_space<vmem>>, vector<1x8x8xf32>
    %104 = vector.shape_cast %103 : vector<1x8x8xf32> to vector<8x8xf32>
    %105 = vector.shape_cast %102 : vector<8x8xf32> to vector<1x8x8xf32>
    tpu.vector_store %arg16[%c0_56, %c0_57, %c8], %105 {strides = array<i32>} : memref<1x8x32xf32, #tpu.memory_space<vmem>>, vector<1x8x8xf32>,
    %106 = vector.extract_strided_slice %89 {offsets = [0, 16], sizes = [8, 8], strides = [1, 1]} : vector<8x32xf32> to vector<8x8xf32>
    %107 = tpu.transpose %106, [1, 0] : vector<8x8xf32> -> vector<8x8xf32>
    %108 = arith.addf %106, %107 : vector<8x8xf32>
    %109 = arith.mulf %91, %108 : vector<8x8xf32>
    %c0_58 = arith.constant 0 : index
    %c0_59 = arith.constant 0 : index
    %c16 = arith.constant 16 : index
    %110 = vector.load %arg16[%c0_58, %c0_59, %c16] : memref<1x8x32xf32, #tpu.memory_space<vmem>>, vector<1x8x8xf32>
    %111 = vector.shape_cast %110 : vector<1x8x8xf32> to vector<8x8xf32>
    %112 = vector.shape_cast %109 : vector<8x8xf32> to vector<1x8x8xf32>
    tpu.vector_store %arg16[%c0_58, %c0_59, %c16], %112 {strides = array<i32>} : memref<1x8x32xf32, #tpu.memory_space<vmem>>, vector<1x8x8xf32>,
    %113 = vector.extract_strided_slice %89 {offsets = [0, 24], sizes = [8, 8], strides = [1, 1]} : vector<8x32xf32> to vector<8x8xf32>
    %114 = tpu.transpose %113, [1, 0] : vector<8x8xf32> -> vector<8x8xf32>
    %115 = arith.addf %113, %114 : vector<8x8xf32>
    %116 = arith.mulf %91, %115 : vector<8x8xf32>
    %c0_60 = arith.constant 0 : index
    %c0_61 = arith.constant 0 : index
    %c24 = arith.constant 24 : index
    %117 = vector.load %arg16[%c0_60, %c0_61, %c24] : memref<1x8x32xf32, #tpu.memory_space<vmem>>, vector<1x8x8xf32>
    %118 = vector.shape_cast %117 : vector<1x8x8xf32> to vector<8x8xf32>
    %119 = vector.shape_cast %116 : vector<8x8xf32> to vector<1x8x8xf32>
    tpu.vector_store %arg16[%c0_60, %c0_61, %c24], %119 {strides = array<i32>} : memref<1x8x32xf32, #tpu.memory_space<vmem>>, vector<1x8x8xf32>,
    return
  }
  func.func @transform_0(%arg0: i32) -> (i32, i32, i32) {
    %c0_i32 = arith.constant 0 : i32
    %c0_i32_0 = arith.constant 0 : i32
    %c0_i32_1 = arith.constant 0 : i32
    return %arg0, %c0_i32, %c0_i32_0 : i32, i32, i32
  }
  func.func @transform_1(%arg0: i32) -> (i32, i32, i32) {
    %c0_i32 = arith.constant 0 : i32
    %c0_i32_0 = arith.constant 0 : i32
    %c0_i32_1 = arith.constant 0 : i32
    return %arg0, %c0_i32, %c0_i32_0 : i32, i32, i32
  }
  func.func @transform_2(%arg0: i32) -> (i32, i32, i32) {
    %c0_i32 = arith.constant 0 : i32
    %c0_i32_0 = arith.constant 0 : i32
    %c0_i32_1 = arith.constant 0 : i32
    return %arg0, %c0_i32, %c0_i32_0 : i32, i32, i32
  }
  func.func @transform_3(%arg0: i32) -> (i32, i32, i32) {
    %c0_i32 = arith.constant 0 : i32
    %c0_i32_0 = arith.constant 0 : i32
    %c0_i32_1 = arith.constant 0 : i32
    return %arg0, %c0_i32, %c0_i32_0 : i32, i32, i32
  }
  func.func @transform_4(%arg0: i32) -> (i32, i32, i32) {
    %c0_i32 = arith.constant 0 : i32
    %c0_i32_0 = arith.constant 0 : i32
    %c0_i32_1 = arith.constant 0 : i32
    return %arg0, %c0_i32, %c0_i32_0 : i32, i32, i32
  }
  func.func @transform_5(%arg0: i32) -> (i32, i32, i32) {
    %c0_i32 = arith.constant 0 : i32
    %c0_i32_0 = arith.constant 0 : i32
    %c0_i32_1 = arith.constant 0 : i32
    return %arg0, %c0_i32, %c0_i32_0 : i32, i32, i32
  }
  func.func @transform_6(%arg0: i32) -> (i32, i32, i32) {
    %c0_i32 = arith.constant 0 : i32
    %c0_i32_0 = arith.constant 0 : i32
    %c0_i32_1 = arith.constant 0 : i32
    return %arg0, %c0_i32, %c0_i32_0 : i32, i32, i32
  }
  func.func @transform_7(%arg0: i32) -> (i32, i32, i32) {
    %c0_i32 = arith.constant 0 : i32
    %c0_i32_0 = arith.constant 0 : i32
    %c0_i32_1 = arith.constant 0 : i32
    return %arg0, %c0_i32, %c0_i32_0 : i32, i32, i32
  }
  func.func @transform_8(%arg0: i32) -> (i32, i32) {
    %c0_i32 = arith.constant 0 : i32
    %c0_i32_0 = arith.constant 0 : i32
    %c0_i32_1 = arith.constant 0 : i32
    return %c0_i32, %c0_i32_0 : i32, i32
  }
  func.func @transform_9(%arg0: i32) -> (i32, i32) {
    %c0_i32 = arith.constant 0 : i32
    %c0_i32_0 = arith.constant 0 : i32
    %c0_i32_1 = arith.constant 0 : i32
    return %c0_i32, %c0_i32_0 : i32, i32
  }
  func.func @transform_10(%arg0: i32) -> (i32, i32) {
    %c0_i32 = arith.constant 0 : i32
    %c0_i32_0 = arith.constant 0 : i32
    %c0_i32_1 = arith.constant 0 : i32
    return %c0_i32, %c0_i32_0 : i32, i32
  }
  func.func @transform_11(%arg0: i32) -> (i32, i32) {
    %c0_i32 = arith.constant 0 : i32
    %c0_i32_0 = arith.constant 0 : i32
    %c0_i32_1 = arith.constant 0 : i32
    return %c0_i32, %c0_i32_0 : i32, i32
  }
  func.func @transform_12(%arg0: i32) -> (i32, i32) {
    %c0_i32 = arith.constant 0 : i32
    %c0_i32_0 = arith.constant 0 : i32
    %c0_i32_1 = arith.constant 0 : i32
    return %c0_i32, %c0_i32_0 : i32, i32
  }
  func.func @transform_13(%arg0: i32) -> (i32, i32) {
    %c0_i32 = arith.constant 0 : i32
    %c0_i32_0 = arith.constant 0 : i32
    %c0_i32_1 = arith.constant 0 : i32
    return %c0_i32, %c0_i32_0 : i32, i32
  }
  func.func @transform_14(%arg0: i32) -> (i32, i32, i32) {
    %c0_i32 = arith.constant 0 : i32
    %c0_i32_0 = arith.constant 0 : i32
    %c0_i32_1 = arith.constant 0 : i32
    return %arg0, %c0_i32, %c0_i32_0 : i32, i32, i32
  }
  func.func @transform_15(%arg0: i32) -> (i32, i32, i32) {
    %c0_i32 = arith.constant 0 : i32
    %c0_i32_0 = arith.constant 0 : i32
    %c0_i32_1 = arith.constant 0 : i32
    return %arg0, %c0_i32, %c0_i32_0 : i32, i32, i32
  }
}

</mosaic_0001>

<llo_original>
// kernel: tpu_custom_call.1
$region0: #{tpu_custom_call.1}
  #allocation0 [shape = 'u32[]', space=smem, size = 0x4, offset = 0x4, fixed_abs, tag = 'smem constant byte address 0x4 - core index']
  #allocation1 [shape = 'u32[144,128]{1,0:T(1,128)}', space=vmem, size = 0x12000, scoped, tag = 'internal scratch']
  %s0 = inlined_call_operand.vmem [shape: f32[2,8,32], index: 0, kind: input, shape index: {}]
  %s1 = inlined_call_operand.hbm [shape: f32[2,8,8], index: 1, kind: input, shape index: {}]
  %s2 = inlined_call_operand.hbm [shape: f32[2,8,32], index: 2, kind: input, shape index: {}]
  %s3 = inlined_call_operand.hbm [shape: f32[2,8,8], index: 3, kind: input, shape index: {}]
  %s4 = inlined_call_operand.hbm [shape: f32[2,1,8], index: 4, kind: input, shape index: {}]
  %s5 = inlined_call_operand.hbm [shape: f32[2,1,8], index: 5, kind: input, shape index: {}]
  %s6 = inlined_call_operand.hbm [shape: f32[2,1,32], index: 6, kind: input, shape index: {}]
  %s7 = inlined_call_operand.hbm [shape: f32[2,1,32], index: 7, kind: input, shape index: {}]
  %s8 = inlined_call_operand.vmem [shape: bf16[32,32], index: 8, kind: input, shape index: {}]
  %s9 = inlined_call_operand.hbm [shape: f32[1,32], index: 9, kind: input, shape index: {}]
  %s10 = inlined_call_operand.vmem [shape: bf16[32,8], index: 10, kind: input, shape index: {}]
  %s11 = inlined_call_operand.vmem [shape: f32[1,8], index: 11, kind: input, shape index: {}]
  %s12 = inlined_call_operand.hbm [shape: bf16[32,32], index: 12, kind: input, shape index: {}]
  %s13 = inlined_call_operand.vmem [shape: f32[1,32], index: 13, kind: input, shape index: {}]
  %s14 = inlined_call_operand.hbm [shape: f32[2,8,8], index: 14, kind: output, shape index: {0}]
  %s15 = inlined_call_operand.hbm [shape: f32[2,8,32], index: 15, kind: output, shape index: {1}]
  %16 = xla_tuple %s14, %s15
  %s17 = sld [smem:[#allocation0]]
  $region133: #{tpu_custom_call.1} parent=0
    _
  %s19 = ssub.s32 1, %s17
  %s20 = scalar_select 0, %s19, %s17
  $region1: #{tpu_custom_call.1} parent=0
    #allocation2 [shape = 'u8[8192]{0}', space=vmem, size = 0x2000, scoped, tag = 'input window, operand 1']
    #allocation3 [shape = 's32[2]{0}', space=sflag, size = 0x8, scoped, tag = 'scoped memory for tpu_custom_call.1']
    #allocation4 [shape = 's32[2]{0}', space=sflag, size = 0x8, scoped, tag = 'scoped memory for tpu_custom_call.1']
    #allocation5 [shape = 'u8[8192]{0}', space=vmem, size = 0x2000, scoped, tag = 'input window, operand 2']
    #allocation6 [shape = 's32[2]{0}', space=sflag, size = 0x8, scoped, tag = 'scoped memory for tpu_custom_call.1']
    #allocation7 [shape = 'u8[8192]{0}', space=vmem, size = 0x2000, scoped, tag = 'input window, operand 3']
    #allocation8 [shape = 'u8[1024]{0}', space=vmem, size = 0x400, scoped, tag = 'input window, operand 4']
    #allocation9 [shape = 's32[2]{0}', space=sflag, size = 0x8, scoped, tag = 'scoped memory for tpu_custom_call.1']
    #allocation10 [shape = 'u8[1024]{0}', space=vmem, size = 0x400, scoped, tag = 'input window, operand 5']
    #allocation11 [shape = 'u8[1024]{0}', space=vmem, size = 0x400, scoped, tag = 'input window, operand 6']
    #allocation12 [shape = 's32[2]{0}', space=sflag, size = 0x8, scoped, tag = 'scoped memory for tpu_custom_call.1']
    #allocation13 [shape = 'u8[1024]{0}', space=vmem, size = 0x400, scoped, tag = 'input window, operand 7']
    #allocation14 [shape = 'u8[512]{0}', space=vmem, size = 0x400, scoped, tag = 'input window, operand 9, single buffered']
    #allocation15 [shape = 's32[1]{0}', space=sflag, size = 0x4, scoped, tag = 'scoped memory for tpu_custom_call.1']
    #allocation16 [shape = 'u8[8192]{0}', space=vmem, size = 0x2000, scoped, tag = 'input window, operand 12, single buffered']
    #allocation17 [shape = 'u8[8192]{0}', space=vmem, size = 0x2000, scoped, tag = 'output window, operand 0']
    #allocation18 [shape = 'u8[8192]{0}', space=vmem, size = 0x2000, scoped, tag = 'output window, operand 1']
    #allocation19 [shape = 's32[2]{0}', space=sflag, size = 0x8, scoped, tag = 'scoped memory for tpu_custom_call.1']
    %21 = vsyncpa [#allocation3], 0
    %s22 = scalar_lea.sflag [#allocation3], 1
    %23 = vsyncpa %s22, 0
    %24 = vsyncpa [#allocation6], 0
    %s25 = scalar_lea.sflag [#allocation6], 1
    %26 = vsyncpa %s25, 0
    %27 = vsyncpa [#allocation9], 0
    %s28 = scalar_lea.sflag [#allocation9], 1
    %29 = vsyncpa %s28, 0
    %30 = vsyncpa [#allocation12], 0
    %s31 = scalar_lea.sflag [#allocation12], 1
    %32 = vsyncpa %s31, 0
    %33 = vsyncpa [#allocation15], 0
    %34 = vsyncpa [#allocation4], 0
    %s35 = scalar_lea.sflag [#allocation4], 1
    %36 = vsyncpa %s35, 0
    %37 = vsyncpa [#allocation19], 0
    %s38 = scalar_lea.sflag [#allocation19], 1
    %39 = vsyncpa %s38, 0
    loop: start=0, step=1, limit=4
    $region2: #{tpu_custom_call.1} parent=1 // loop_pre_header
      _
    $region3: #{tpu_custom_call.1} parent=1 // loop_header
      %s41 = sphi 0, %s45
      %p42 = scmp.ge.s32.totalorder %s41, 4
      %s51 = sphi 0, %s53
      %s54 = sphi 0, %s51
      %s55 = sphi 0, %s54
      %s71 = sphi 0, %s55
      %s77 = sphi 0, %s79
      %s80 = sphi 0, %s77
      %s81 = sphi 0, %s80
      %s97 = sphi 0, %s81
      %s103 = sphi 0, %s105
      %s106 = sphi 0, %s103
      %s107 = sphi 0, %s106
      %s123 = sphi 0, %s107
      %s129 = sphi 0, %s131
      %s132 = sphi 0, %s129
      %s133 = sphi 0, %s132
      %s149 = sphi 0, %s133
      %s155 = sphi 0, %s157
      %s158 = sphi 0, %s155
      %s159 = sphi 0, %s158
      %s175 = sphi 0, %s159
      %s181 = sphi 0, %s183
      %s184 = sphi 0, %s181
      %s185 = sphi 0, %s184
      %s201 = sphi 0, %s185
      %s207 = sphi 0, %s209
      %s210 = sphi 0, %s207
      %s211 = sphi 0, %s210
      %s227 = sphi 0, %s211
      %s233 = sphi 0, %s235
      %s236 = sphi 0, %s233
      %s237 = sphi 0, %s236
      %s253 = sphi 0, %s237
      %s257 = sphi 0, %s257
      %s259 = sphi 0, %s257
      %s260 = sphi 0, %s259
      %s274 = sphi 0, %s260
      %s278 = sphi 0, %s278
      %s280 = sphi 0, %s278
      %s281 = sphi 0, %s280
      %s295 = sphi 0, %s281
      %s299 = sphi 0, %s299
      %s301 = sphi 0, %s299
      %s302 = sphi 0, %s301
      %s316 = sphi 0, %s302
      %s320 = sphi 0, %s320
      %s322 = sphi 0, %s320
      %s323 = sphi 0, %s322
      %s337 = sphi 0, %s323
      %s341 = sphi 0, %s341
      %s343 = sphi 0, %s341
      %s344 = sphi 0, %s343
      %s358 = sphi 0, %s344
      %s362 = sphi 0, %s362
      %s364 = sphi 0, %s362
      %s365 = sphi 0, %s364
      %s379 = sphi 0, %s365
      %s385 = sphi 0, %s387
      %s388 = sphi 0, %s385
      %s389 = sphi 0, %s388
      %s405 = sphi 0, %s389
      %s411 = sphi 0, %s413
      %s414 = sphi 0, %s411
      %s415 = sphi 0, %s414
      %s431 = sphi 0, %s415
    $region4: #{tpu_custom_call.1} parent=1 // loop_header_branch
      %44 = sbr.rel (%p42) target = $region8
    $region5: #{tpu_custom_call.1} parent=1 // loop_body
      %s46 = ssub.s32 %s41, 1
      %s47 = ssub.s32 %s41, 2
      %s48 = sadd.s32 %s41, 1
      %s49 = ssub.s32 %s41, %s48
      %p50 = scmp.eq.s32.totalorder %s49, 0
      %s52 = sadd.s32 %s51, 1
      %s53 = scalar_select %p50, %s51, %s52
      %p56 = pneg %p50
      %p57 = scmp.eq.s32.totalorder %s41, 1
      %p58 = por %p56, %p57
      %p59 = scmp.ne.s32.totalorder %s51, %s54
      %p60 = scmp.eq.s32.totalorder %s41, 0
      %p61 = por %p59, %p60
      %p62 = scmp.ne.s32.totalorder %s51, %s54
      %p63 = scmp.eq.s32.totalorder %s46, 1
      %p64 = por %p62, %p63
      %p65 = scmp.ne.s32.totalorder %s54, %s55
      %p66 = scmp.eq.s32.totalorder %s46, 0
      %p67 = por %p65, %p66
      %p68 = scmp.ne.s32.totalorder %s54, %s55
      %p69 = scmp.eq.s32.totalorder %s47, 1
      %p70 = por %p68, %p69
      %p72 = scmp.ne.s32.totalorder %s55, %s71
      %p73 = scmp.eq.s32.totalorder %s47, 0
      %p74 = por %p72, %p73
      %s75 = ssub.s32 %s41, %s48
      %p76 = scmp.eq.s32.totalorder %s75, 0
      %s78 = sadd.s32 %s77, 1
      %s79 = scalar_select %p76, %s77, %s78
      %p82 = pneg %p76
      %p83 = scmp.eq.s32.totalorder %s41, 1
      %p84 = por %p82, %p83
      %p85 = scmp.ne.s32.totalorder %s77, %s80
      %p86 = scmp.eq.s32.totalorder %s41, 0
      %p87 = por %p85, %p86
      %p88 = scmp.ne.s32.totalorder %s77, %s80
      %p89 = scmp.eq.s32.totalorder %s46, 1
      %p90 = por %p88, %p89
      %p91 = scmp.ne.s32.totalorder %s80, %s81
      %p92 = scmp.eq.s32.totalorder %s46, 0
      %p93 = por %p91, %p92
      %p94 = scmp.ne.s32.totalorder %s80, %s81
      %p95 = scmp.eq.s32.totalorder %s47, 1
      %p96 = por %p94, %p95
      %p98 = scmp.ne.s32.totalorder %s81, %s97
      %p99 = scmp.eq.s32.totalorder %s47, 0
      %p100 = por %p98, %p99
      %s101 = ssub.s32 %s41, %s48
      %p102 = scmp.eq.s32.totalorder %s101, 0
      %s104 = sadd.s32 %s103, 1
      %s105 = scalar_select %p102, %s103, %s104
      %p108 = pneg %p102
      %p109 = scmp.eq.s32.totalorder %s41, 1
      %p110 = por %p108, %p109
      %p111 = scmp.ne.s32.totalorder %s103, %s106
      %p112 = scmp.eq.s32.totalorder %s41, 0
      %p113 = por %p111, %p112
      %p114 = scmp.ne.s32.totalorder %s103, %s106
      %p115 = scmp.eq.s32.totalorder %s46, 1
      %p116 = por %p114, %p115
      %p117 = scmp.ne.s32.totalorder %s106, %s107
      %p118 = scmp.eq.s32.totalorder %s46, 0
      %p119 = por %p117, %p118
      %p120 = scmp.ne.s32.totalorder %s106, %s107
      %p121 = scmp.eq.s32.totalorder %s47, 1
      %p122 = por %p120, %p121
      %p124 = scmp.ne.s32.totalorder %s107, %s123
      %p125 = scmp.eq.s32.totalorder %s47, 0
      %p126 = por %p124, %p125
      %s127 = ssub.s32 %s41, %s48
      %p128 = scmp.eq.s32.totalorder %s127, 0
      %s130 = sadd.s32 %s129, 1
      %s131 = scalar_select %p128, %s129, %s130
      %p134 = pneg %p128
      %p135 = scmp.eq.s32.totalorder %s41, 1
      %p136 = por %p134, %p135
      %p137 = scmp.ne.s32.totalorder %s129, %s132
      %p138 = scmp.eq.s32.totalorder %s41, 0
      %p139 = por %p137, %p138
      %p140 = scmp.ne.s32.totalorder %s129, %s132
      %p141 = scmp.eq.s32.totalorder %s46, 1
      %p142 = por %p140, %p141
      %p143 = scmp.ne.s32.totalorder %s132, %s133
      %p144 = scmp.eq.s32.totalorder %s46, 0
      %p145 = por %p143, %p144
      %p146 = scmp.ne.s32.totalorder %s132, %s133
      %p147 = scmp.eq.s32.totalorder %s47, 1
      %p148 = por %p146, %p147
      %p150 = scmp.ne.s32.totalorder %s133, %s149
      %p151 = scmp.eq.s32.totalorder %s47, 0
      %p152 = por %p150, %p151
      %s153 = ssub.s32 %s41, %s48
      %p154 = scmp.eq.s32.totalorder %s153, 0
      %s156 = sadd.s32 %s155, 1
      %s157 = scalar_select %p154, %s155, %s156
      %p160 = pneg %p154
      %p161 = scmp.eq.s32.totalorder %s41, 1
      %p162 = por %p160, %p161
      %p163 = scmp.ne.s32.totalorder %s155, %s158
      %p164 = scmp.eq.s32.totalorder %s41, 0
      %p165 = por %p163, %p164
      %p166 = scmp.ne.s32.totalorder %s155, %s158
      %p167 = scmp.eq.s32.totalorder %s46, 1
      %p168 = por %p166, %p167
      %p169 = scmp.ne.s32.totalorder %s158, %s159
      %p170 = scmp.eq.s32.totalorder %s46, 0
      %p171 = por %p169, %p170
      %p172 = scmp.ne.s32.totalorder %s158, %s159
      %p173 = scmp.eq.s32.totalorder %s47, 1
      %p174 = por %p172, %p173
      %p176 = scmp.ne.s32.totalorder %s159, %s175
      %p177 = scmp.eq.s32.totalorder %s47, 0
      %p178 = por %p176, %p177
      %s179 = ssub.s32 %s41, %s48
      %p180 = scmp.eq.s32.totalorder %s179, 0
      %s182 = sadd.s32 %s181, 1
      %s183 = scalar_select %p180, %s181, %s182
      %p186 = pneg %p180
      %p187 = scmp.eq.s32.totalorder %s41, 1
      %p188 = por %p186, %p187
      %p189 = scmp.ne.s32.totalorder %s181, %s184
      %p190 = scmp.eq.s32.totalorder %s41, 0
      %p191 = por %p189, %p190
      %p192 = scmp.ne.s32.totalorder %s181, %s184
      %p193 = scmp.eq.s32.totalorder %s46, 1
      %p194 = por %p192, %p193
      %p195 = scmp.ne.s32.totalorder %s184, %s185
      %p196 = scmp.eq.s32.totalorder %s46, 0
      %p197 = por %p195, %p196
      %p198 = scmp.ne.s32.totalorder %s184, %s185
      %p199 = scmp.eq.s32.totalorder %s47, 1
      %p200 = por %p198, %p199
      %p202 = scmp.ne.s32.totalorder %s185, %s201
      %p203 = scmp.eq.s32.totalorder %s47, 0
      %p204 = por %p202, %p203
      %s205 = ssub.s32 %s41, %s48
      %p206 = scmp.eq.s32.totalorder %s205, 0
      %s208 = sadd.s32 %s207, 1
      %s209 = scalar_select %p206, %s207, %s208
      %p212 = pneg %p206
      %p213 = scmp.eq.s32.totalorder %s41, 1
      %p214 = por %p212, %p213
      %p215 = scmp.ne.s32.totalorder %s207, %s210
      %p216 = scmp.eq.s32.totalorder %s41, 0
      %p217 = por %p215, %p216
      %p218 = scmp.ne.s32.totalorder %s207, %s210
      %p219 = scmp.eq.s32.totalorder %s46, 1
      %p220 = por %p218, %p219
      %p221 = scmp.ne.s32.totalorder %s210, %s211
      %p222 = scmp.eq.s32.totalorder %s46, 0
      %p223 = por %p221, %p222
      %p224 = scmp.ne.s32.totalorder %s210, %s211
      %p225 = scmp.eq.s32.totalorder %s47, 1
      %p226 = por %p224, %p225
      %p228 = scmp.ne.s32.totalorder %s211, %s227
      %p229 = scmp.eq.s32.totalorder %s47, 0
      %p230 = por %p228, %p229
      %s231 = ssub.s32 %s41, %s48
      %p232 = scmp.eq.s32.totalorder %s231, 0
      %s234 = sadd.s32 %s233, 1
      %s235 = scalar_select %p232, %s233, %s234
      %p238 = pneg %p232
      %p239 = scmp.eq.s32.totalorder %s41, 1
      %p240 = por %p238, %p239
      %p241 = scmp.ne.s32.totalorder %s233, %s236
      %p242 = scmp.eq.s32.totalorder %s41, 0
      %p243 = por %p241, %p242
      %p244 = scmp.ne.s32.totalorder %s233, %s236
      %p245 = scmp.eq.s32.totalorder %s46, 1
      %p246 = por %p244, %p245
      %p247 = scmp.ne.s32.totalorder %s236, %s237
      %p248 = scmp.eq.s32.totalorder %s46, 0
      %p249 = por %p247, %p248
      %p250 = scmp.ne.s32.totalorder %s236, %s237
      %p251 = scmp.eq.s32.totalorder %s47, 1
      %p252 = por %p250, %p251
      %p254 = scmp.ne.s32.totalorder %s237, %s253
      %p255 = scmp.eq.s32.totalorder %s47, 0
      %p256 = por %p254, %p255
      %s258 = sadd.s32 %s257, 1
      %p261 = scmp.eq.s32.totalorder %s41, 1
      %p262 = scmp.ne.s32.totalorder %s257, %s259
      %p263 = scmp.eq.s32.totalorder %s41, 0
      %p264 = por %p262, %p263
      %p265 = scmp.ne.s32.totalorder %s257, %s259
      %p266 = scmp.eq.s32.totalorder %s46, 1
      %p267 = por %p265, %p266
      %p268 = scmp.ne.s32.totalorder %s259, %s260
      %p269 = scmp.eq.s32.totalorder %s46, 0
      %p270 = por %p268, %p269
      %p271 = scmp.ne.s32.totalorder %s259, %s260
      %p272 = scmp.eq.s32.totalorder %s47, 1
      %p273 = por %p271, %p272
      %p275 = scmp.ne.s32.totalorder %s260, %s274
      %p276 = scmp.eq.s32.totalorder %s47, 0
      %p277 = por %p275, %p276
      %s279 = sadd.s32 %s278, 1
      %p282 = scmp.eq.s32.totalorder %s41, 1
      %p283 = scmp.ne.s32.totalorder %s278, %s280
      %p284 = scmp.eq.s32.totalorder %s41, 0
      %p285 = por %p283, %p284
      %p286 = scmp.ne.s32.totalorder %s278, %s280
      %p287 = scmp.eq.s32.totalorder %s46, 1
      %p288 = por %p286, %p287
      %p289 = scmp.ne.s32.totalorder %s280, %s281
      %p290 = scmp.eq.s32.totalorder %s46, 0
      %p291 = por %p289, %p290
      %p292 = scmp.ne.s32.totalorder %s280, %s281
      %p293 = scmp.eq.s32.totalorder %s47, 1
      %p294 = por %p292, %p293
      %p296 = scmp.ne.s32.totalorder %s281, %s295
      %p297 = scmp.eq.s32.totalorder %s47, 0
      %p298 = por %p296, %p297
      %s300 = sadd.s32 %s299, 1
      %p303 = scmp.eq.s32.totalorder %s41, 1
      %p304 = scmp.ne.s32.totalorder %s299, %s301
      %p305 = scmp.eq.s32.totalorder %s41, 0
      %p306 = por %p304, %p305
      %p307 = scmp.ne.s32.totalorder %s299, %s301
      %p308 = scmp.eq.s32.totalorder %s46, 1
      %p309 = por %p307, %p308
      %p310 = scmp.ne.s32.totalorder %s301, %s302
      %p311 = scmp.eq.s32.totalorder %s46, 0
      %p312 = por %p310, %p311
      %p313 = scmp.ne.s32.totalorder %s301, %s302
      %p314 = scmp.eq.s32.totalorder %s47, 1
      %p315 = por %p313, %p314
      %p317 = scmp.ne.s32.totalorder %s302, %s316
      %p318 = scmp.eq.s32.totalorder %s47, 0
      %p319 = por %p317, %p318
      %s321 = sadd.s32 %s320, 1
      %p324 = scmp.eq.s32.totalorder %s41, 1
      %p325 = scmp.ne.s32.totalorder %s320, %s322
      %p326 = scmp.eq.s32.totalorder %s41, 0
      %p327 = por %p325, %p326
      %p328 = scmp.ne.s32.totalorder %s320, %s322
      %p329 = scmp.eq.s32.totalorder %s46, 1
      %p330 = por %p328, %p329
      %p331 = scmp.ne.s32.totalorder %s322, %s323
      %p332 = scmp.eq.s32.totalorder %s46, 0
      %p333 = por %p331, %p332
      %p334 = scmp.ne.s32.totalorder %s322, %s323
      %p335 = scmp.eq.s32.totalorder %s47, 1
      %p336 = por %p334, %p335
      %p338 = scmp.ne.s32.totalorder %s323, %s337
      %p339 = scmp.eq.s32.totalorder %s47, 0
      %p340 = por %p338, %p339
      %s342 = sadd.s32 %s341, 1
      %p345 = scmp.eq.s32.totalorder %s41, 1
      %p346 = scmp.ne.s32.totalorder %s341, %s343
      %p347 = scmp.eq.s32.totalorder %s41, 0
      %p348 = por %p346, %p347
      %p349 = scmp.ne.s32.totalorder %s341, %s343
      %p350 = scmp.eq.s32.totalorder %s46, 1
      %p351 = por %p349, %p350
      %p352 = scmp.ne.s32.totalorder %s343, %s344
      %p353 = scmp.eq.s32.totalorder %s46, 0
      %p354 = por %p352, %p353
      %p355 = scmp.ne.s32.totalorder %s343, %s344
      %p356 = scmp.eq.s32.totalorder %s47, 1
      %p357 = por %p355, %p356
      %p359 = scmp.ne.s32.totalorder %s344, %s358
      %p360 = scmp.eq.s32.totalorder %s47, 0
      %p361 = por %p359, %p360
      %s363 = sadd.s32 %s362, 1
      %p366 = scmp.eq.s32.totalorder %s41, 1
      %p367 = scmp.ne.s32.totalorder %s362, %s364
      %p368 = scmp.eq.s32.totalorder %s41, 0
      %p369 = por %p367, %p368
      %p370 = scmp.ne.s32.totalorder %s362, %s364
      %p371 = scmp.eq.s32.totalorder %s46, 1
      %p372 = por %p370, %p371
      %p373 = scmp.ne.s32.totalorder %s364, %s365
      %p374 = scmp.eq.s32.totalorder %s46, 0
      %p375 = por %p373, %p374
      %p376 = scmp.ne.s32.totalorder %s364, %s365
      %p377 = scmp.eq.s32.totalorder %s47, 1
      %p378 = por %p376, %p377
      %p380 = scmp.ne.s32.totalorder %s365, %s379
      %p381 = scmp.eq.s32.totalorder %s47, 0
      %p382 = por %p380, %p381
      %s383 = ssub.s32 %s41, %s48
      %p384 = scmp.eq.s32.totalorder %s383, 0
      %s386 = sadd.s32 %s385, 1
      %s387 = scalar_select %p384, %s385, %s386
      %p390 = pneg %p384
      %p391 = scmp.eq.s32.totalorder %s41, 1
      %p392 = por %p390, %p391
      %p393 = scmp.ne.s32.totalorder %s385, %s388
      %p394 = scmp.eq.s32.totalorder %s41, 0
      %p395 = por %p393, %p394
      %p396 = scmp.ne.s32.totalorder %s385, %s388
      %p397 = scmp.eq.s32.totalorder %s46, 1
      %p398 = por %p396, %p397
      %p399 = scmp.ne.s32.totalorder %s388, %s389
      %p400 = scmp.eq.s32.totalorder %s46, 0
      %p401 = por %p399, %p400
      %p402 = scmp.ne.s32.totalorder %s388, %s389
      %p403 = scmp.eq.s32.totalorder %s47, 1
      %p404 = por %p402, %p403
      %p406 = scmp.ne.s32.totalorder %s389, %s405
      %p407 = scmp.eq.s32.totalorder %s47, 0
      %p408 = por %p406, %p407
      %s409 = ssub.s32 %s41, %s48
      %p410 = scmp.eq.s32.totalorder %s409, 0
      %s412 = sadd.s32 %s411, 1
      %s413 = scalar_select %p410, %s411, %s412
      %p416 = pneg %p410
      %p417 = scmp.eq.s32.totalorder %s41, 1
      %p418 = por %p416, %p417
      %p419 = scmp.ne.s32.totalorder %s411, %s414
      %p420 = scmp.eq.s32.totalorder %s41, 0
      %p421 = por %p419, %p420
      %p422 = scmp.ne.s32.totalorder %s411, %s414
      %p423 = scmp.eq.s32.totalorder %s46, 1
      %p424 = por %p422, %p423
      %p425 = scmp.ne.s32.totalorder %s414, %s415
      %p426 = scmp.eq.s32.totalorder %s46, 0
      %p427 = por %p425, %p426
      %p428 = scmp.ne.s32.totalorder %s414, %s415
      %p429 = scmp.eq.s32.totalorder %s47, 1
      %p430 = por %p428, %p429
      %p432 = scmp.ne.s32.totalorder %s415, %s431
      %p433 = scmp.eq.s32.totalorder %s47, 0
      %p434 = por %p432, %p433
      %p435 = scmp.le.s32.totalorder 1, %s41
      %p436 = scmp.lt.s32.totalorder %s41, 3
      %p437 = pnand %p435, %p436
      %p438 = pneg %p437
      // Predicated region
      $region9: #{tpu_custom_call.1} parent=5 // pred_check
        _
      $region10: #{tpu_custom_call.1} parent=5 // pred_check_branch
        %440 = sbr.rel (%p437) target = $region12
      $region11: #{tpu_custom_call.1} parent=5 // pred_region
        %s441 = ssub.s32 %s41, 1
        // Predicated region
        $region13: #{tpu_custom_call.1} parent=11 // pred_check
          %p442 = pneg %p270
        $region14: #{tpu_custom_call.1} parent=11 // pred_check_branch
          %444 = sbr.rel (%p442) target = $region16
        $region15: #{tpu_custom_call.1} parent=11 // pred_region
          _
        $region16: #{tpu_custom_call.1} parent=11 // pred_fallthru
          _
        // Predicated region
        $region17: #{tpu_custom_call.1} parent=11 // pred_check
          %p445 = pneg %p291
        $region18: #{tpu_custom_call.1} parent=11 // pred_check_branch
          %447 = sbr.rel (%p445) target = $region20
        $region19: #{tpu_custom_call.1} parent=11 // pred_region
          %s449 = ssub.s32 16, 16
          %450 = vsyncadd [#allocation15], %s449
          %s452 = sshll.u32 [#allocation14], 4
          %s453 = int_to_ptr.vmem [resolvable:$true] %s452
          %455 = dma.hbm_to_vmem [thread:$0]  %s9, 16, %s453, [#allocation15]
        $region20: #{tpu_custom_call.1} parent=11 // pred_fallthru
          _
        // Predicated region
        $region21: #{tpu_custom_call.1} parent=11 // pred_check
          %p456 = pneg %p312
        $region22: #{tpu_custom_call.1} parent=11 // pred_check_branch
          %458 = sbr.rel (%p456) target = $region24
        $region23: #{tpu_custom_call.1} parent=11 // pred_region
          _
        $region24: #{tpu_custom_call.1} parent=11 // pred_fallthru
          _
        // Predicated region
        $region25: #{tpu_custom_call.1} parent=11 // pred_check
          %p459 = pneg %p333
        $region26: #{tpu_custom_call.1} parent=11 // pred_check_branch
          %461 = sbr.rel (%p459) target = $region28
        $region27: #{tpu_custom_call.1} parent=11 // pred_region
          _
        $region28: #{tpu_custom_call.1} parent=11 // pred_fallthru
          _
        // Predicated region
        $region29: #{tpu_custom_call.1} parent=11 // pred_check
          %p462 = pneg %p354
        $region30: #{tpu_custom_call.1} parent=11 // pred_check_branch
          %464 = sbr.rel (%p462) target = $region32
        $region31: #{tpu_custom_call.1} parent=11 // pred_region
          %s466 = ssub.s32 256, 256
          %467 = vsyncadd [#allocation15], %s466
          %s468 = sshll.u32 [#allocation16], 4
          %s469 = int_to_ptr.vmem [resolvable:$true] %s468
          %474 = dma.hbm_to_vmem [thread:$0]  %s12, 256, %s469, [#allocation15], 64, 64, 4
        $region32: #{tpu_custom_call.1} parent=11 // pred_fallthru
          _
        // Predicated region
        $region33: #{tpu_custom_call.1} parent=11 // pred_check
          %p475 = pneg %p375
        $region34: #{tpu_custom_call.1} parent=11 // pred_check_branch
          %477 = sbr.rel (%p475) target = $region36
        $region35: #{tpu_custom_call.1} parent=11 // pred_region
          _
        $region36: #{tpu_custom_call.1} parent=11 // pred_fallthru
          _
      $region12: #{tpu_custom_call.1} parent=5 // pred_fallthru
        _
      %p478 = scmp.lt.s32.totalorder %s41, 2
      // Predicated region
      $region37: #{tpu_custom_call.1} parent=5 // pred_check
        %p479 = pneg %p478
      $region38: #{tpu_custom_call.1} parent=5 // pred_check_branch
        %481 = sbr.rel (%p479) target = $region40
      $region39: #{tpu_custom_call.1} parent=5 // pred_region
        // Predicated region
        $region41: #{tpu_custom_call.1} parent=39 // pred_check
          %p482 = pneg %p61
        $region42: #{tpu_custom_call.1} parent=39 // pred_check_branch
          %484 = sbr.rel (%p482) target = $region44
        $region43: #{tpu_custom_call.1} parent=39 // pred_region
          %p485 = scmp.lt.s32.totalorder %s41, 1
          %s486 = scalar_select %p485, %s41, 1
          %s487 = smul.addr %s486, 8
          %s488 = scalar_lea.vmem %s0, %s487
        $region44: #{tpu_custom_call.1} parent=39 // pred_fallthru
          _
        // Predicated region
        $region45: #{tpu_custom_call.1} parent=39 // pred_check
          %p489 = pneg %p87
        $region46: #{tpu_custom_call.1} parent=39 // pred_check_branch
          %491 = sbr.rel (%p489) target = $region48
        $region47: #{tpu_custom_call.1} parent=39 // pred_region
          %s492 = sand.u32 %s77, 1
          %s493 = scalar_lea.sflag [#allocation3], %s492
          %s494 = sand.u32 %s77, 1
          %s495 = smul.addr %s494, 8
          %s496 = scalar_lea.vmem [#allocation2], %s495
          %s498 = ssub.s32 128, 128
          %499 = vsyncadd %s493, %s498
          %s500 = smul.addr %s41, 128
          %s501 = scalar_lea.hbm %s1, %s500
          %s503 = sshll.u32 %s496, 4
          %s504 = int_to_ptr.vmem [resolvable:$true] %s503
          %506 = dma.hbm_to_vmem [thread:$0]  %s501, 128, %s504, %s493
        $region48: #{tpu_custom_call.1} parent=39 // pred_fallthru
          _
        // Predicated region
        $region49: #{tpu_custom_call.1} parent=39 // pred_check
          %p507 = pneg %p113
        $region50: #{tpu_custom_call.1} parent=39 // pred_check_branch
          %509 = sbr.rel (%p507) target = $region52
        $region51: #{tpu_custom_call.1} parent=39 // pred_region
          %s510 = sand.u32 %s41, 1
          %s511 = scalar_lea.sflag [#allocation6], %s510
          %s512 = sand.u32 %s103, 1
          %s513 = smul.addr %s512, 8
          %s514 = scalar_lea.vmem [#allocation5], %s513
          %s516 = ssub.s32 128, 128
          %517 = vsyncadd %s511, %s516
          %s518 = smul.addr %s41, 128
          %s519 = scalar_lea.hbm %s2, %s518
          %s521 = sshll.u32 %s514, 4
          %s522 = int_to_ptr.vmem [resolvable:$true] %s521
          %524 = dma.hbm_to_vmem [thread:$0]  %s519, 128, %s522, %s511
        $region52: #{tpu_custom_call.1} parent=39 // pred_fallthru
          _
        // Predicated region
        $region53: #{tpu_custom_call.1} parent=39 // pred_check
          %p525 = pneg %p139
        $region54: #{tpu_custom_call.1} parent=39 // pred_check_branch
          %527 = sbr.rel (%p525) target = $region56
        $region55: #{tpu_custom_call.1} parent=39 // pred_region
          %s528 = sand.u32 %s41, 1
          %s529 = scalar_lea.sflag [#allocation6], %s528
          %s530 = sand.u32 %s129, 1
          %s531 = smul.addr %s530, 8
          %s532 = scalar_lea.vmem [#allocation7], %s531
          %s534 = ssub.s32 128, 128
          %535 = vsyncadd %s529, %s534
          %s536 = smul.addr %s41, 128
          %s537 = scalar_lea.hbm %s3, %s536
          %s539 = sshll.u32 %s532, 4
          %s540 = int_to_ptr.vmem [resolvable:$true] %s539
          %542 = dma.hbm_to_vmem [thread:$0]  %s537, 128, %s540, %s529
        $region56: #{tpu_custom_call.1} parent=39 // pred_fallthru
          _
        // Predicated region
        $region57: #{tpu_custom_call.1} parent=39 // pred_check
          %p543 = pneg %p165
        $region58: #{tpu_custom_call.1} parent=39 // pred_check_branch
          %545 = sbr.rel (%p543) target = $region60
        $region59: #{tpu_custom_call.1} parent=39 // pred_region
          %s546 = sand.u32 %s41, 1
          %s547 = scalar_lea.sflag [#allocation9], %s546
          %s548 = sand.u32 %s155, 1
          %s549 = scalar_lea.vmem [#allocation8], %s548
          %s551 = ssub.s32 16, 16
          %552 = vsyncadd %s547, %s551
          %s553 = smul.addr %s41, 16
          %s554 = scalar_lea.hbm %s4, %s553
          %s556 = sshll.u32 %s549, 4
          %s557 = int_to_ptr.vmem [resolvable:$true] %s556
          %559 = dma.hbm_to_vmem [thread:$0]  %s554, 16, %s557, %s547
        $region60: #{tpu_custom_call.1} parent=39 // pred_fallthru
          _
        // Predicated region
        $region61: #{tpu_custom_call.1} parent=39 // pred_check
          %p560 = pneg %p191
        $region62: #{tpu_custom_call.1} parent=39 // pred_check_branch
          %562 = sbr.rel (%p560) target = $region64
        $region63: #{tpu_custom_call.1} parent=39 // pred_region
          %s563 = sand.u32 %s41, 1
          %s564 = scalar_lea.sflag [#allocation9], %s563
          %s565 = sand.u32 %s181, 1
          %s566 = scalar_lea.vmem [#allocation10], %s565
          %s568 = ssub.s32 16, 16
          %569 = vsyncadd %s564, %s568
          %s570 = smul.addr %s41, 16
          %s571 = scalar_lea.hbm %s5, %s570
          %s573 = sshll.u32 %s566, 4
          %s574 = int_to_ptr.vmem [resolvable:$true] %s573
          %576 = dma.hbm_to_vmem [thread:$0]  %s571, 16, %s574, %s564
        $region64: #{tpu_custom_call.1} parent=39 // pred_fallthru
          _
        // Predicated region
        $region65: #{tpu_custom_call.1} parent=39 // pred_check
          %p577 = pneg %p217
        $region66: #{tpu_custom_call.1} parent=39 // pred_check_branch
          %579 = sbr.rel (%p577) target = $region68
        $region67: #{tpu_custom_call.1} parent=39 // pred_region
          %s580 = sand.u32 %s41, 1
          %s581 = scalar_lea.sflag [#allocation12], %s580
          %s582 = sand.u32 %s207, 1
          %s583 = scalar_lea.vmem [#allocation11], %s582
          %s585 = ssub.s32 16, 16
          %586 = vsyncadd %s581, %s585
          %s587 = smul.addr %s41, 16
          %s588 = scalar_lea.hbm %s6, %s587
          %s590 = sshll.u32 %s583, 4
          %s591 = int_to_ptr.vmem [resolvable:$true] %s590
          %593 = dma.hbm_to_vmem [thread:$0]  %s588, 16, %s591, %s581
        $region68: #{tpu_custom_call.1} parent=39 // pred_fallthru
          _
        // Predicated region
        $region69: #{tpu_custom_call.1} parent=39 // pred_check
          %p594 = pneg %p243
        $region70: #{tpu_custom_call.1} parent=39 // pred_check_branch
          %596 = sbr.rel (%p594) target = $region72
        $region71: #{tpu_custom_call.1} parent=39 // pred_region
          %s597 = sand.u32 %s41, 1
          %s598 = scalar_lea.sflag [#allocation12], %s597
          %s599 = sand.u32 %s233, 1
          %s600 = scalar_lea.vmem [#allocation13], %s599
          %s602 = ssub.s32 16, 16
          %603 = vsyncadd %s598, %s602
          %s604 = smul.addr %s41, 16
          %s605 = scalar_lea.hbm %s7, %s604
          %s607 = sshll.u32 %s600, 4
          %s608 = int_to_ptr.vmem [resolvable:$true] %s607
          %610 = dma.hbm_to_vmem [thread:$0]  %s605, 16, %s608, %s598
        $region72: #{tpu_custom_call.1} parent=39 // pred_fallthru
          _
      $region40: #{tpu_custom_call.1} parent=5 // pred_fallthru
        _
      %p611 = scmp.le.s32.totalorder 1, %s41
      %p612 = scmp.lt.s32.totalorder %s41, 3
      %p613 = pnand %p611, %p612
      %p614 = pneg %p613
      // Predicated region
      $region73: #{tpu_custom_call.1} parent=5 // pred_check
        _
      $region74: #{tpu_custom_call.1} parent=5 // pred_check_branch
        %616 = sbr.rel (%p613) target = $region76
      $region75: #{tpu_custom_call.1} parent=5 // pred_region
        %s617 = ssub.s32 %s41, 1
        %s618 = sand.u32 %s80, 1
        %s619 = scalar_lea.sflag [#allocation3], %s618
        %s620 = sand.u32 %s80, 1
        %s621 = smul.addr %s620, 8
        %s622 = scalar_lea.vmem [#allocation2], %s621
        // Predicated region
        $region77: #{tpu_custom_call.1} parent=75 // pred_check
          %p623 = pneg %p93
        $region78: #{tpu_custom_call.1} parent=75 // pred_check_branch
          %625 = sbr.rel (%p623) target = $region80
        $region79: #{tpu_custom_call.1} parent=75 // pred_region
          %626 = dma.done %s619, 128
        $region80: #{tpu_custom_call.1} parent=75 // pred_fallthru
          _
        %s627 = sand.u32 %s46, 1
        %s628 = scalar_lea.sflag [#allocation6], %s627
        %s629 = sand.u32 %s106, 1
        %s630 = smul.addr %s629, 8
        %s631 = scalar_lea.vmem [#allocation5], %s630
        // Predicated region
        $region81: #{tpu_custom_call.1} parent=75 // pred_check
          %p632 = pneg %p119
        $region82: #{tpu_custom_call.1} parent=75 // pred_check_branch
          %634 = sbr.rel (%p632) target = $region84
        $region83: #{tpu_custom_call.1} parent=75 // pred_region
          %635 = dma.done %s628, 128
        $region84: #{tpu_custom_call.1} parent=75 // pred_fallthru
          _
        %s636 = sand.u32 %s46, 1
        %s637 = scalar_lea.sflag [#allocation6], %s636
        %s638 = sand.u32 %s132, 1
        %s639 = smul.addr %s638, 8
        %s640 = scalar_lea.vmem [#allocation7], %s639
        // Predicated region
        $region85: #{tpu_custom_call.1} parent=75 // pred_check
          %p641 = pneg %p145
        $region86: #{tpu_custom_call.1} parent=75 // pred_check_branch
          %643 = sbr.rel (%p641) target = $region88
        $region87: #{tpu_custom_call.1} parent=75 // pred_region
          %644 = dma.done %s637, 128
        $region88: #{tpu_custom_call.1} parent=75 // pred_fallthru
          _
        %s645 = sand.u32 %s46, 1
        %s646 = scalar_lea.sflag [#allocation9], %s645
        %s647 = sand.u32 %s158, 1
        %s648 = scalar_lea.vmem [#allocation8], %s647
        // Predicated region
        $region89: #{tpu_custom_call.1} parent=75 // pred_check
          %p649 = pneg %p171
        $region90: #{tpu_custom_call.1} parent=75 // pred_check_branch
          %651 = sbr.rel (%p649) target = $region92
        $region91: #{tpu_custom_call.1} parent=75 // pred_region
          %652 = dma.done %s646, 16
        $region92: #{tpu_custom_call.1} parent=75 // pred_fallthru
          _
        %s653 = sand.u32 %s46, 1
        %s654 = scalar_lea.sflag [#allocation9], %s653
        %s655 = sand.u32 %s184, 1
        %s656 = scalar_lea.vmem [#allocation10], %s655
        // Predicated region
        $region93: #{tpu_custom_call.1} parent=75 // pred_check
          %p657 = pneg %p197
        $region94: #{tpu_custom_call.1} parent=75 // pred_check_branch
          %659 = sbr.rel (%p657) target = $region96
        $region95: #{tpu_custom_call.1} parent=75 // pred_region
          %660 = dma.done %s654, 16
        $region96: #{tpu_custom_call.1} parent=75 // pred_fallthru
          _
        %s661 = sand.u32 %s46, 1
        %s662 = scalar_lea.sflag [#allocation12], %s661
        %s663 = sand.u32 %s210, 1
        %s664 = scalar_lea.vmem [#allocation11], %s663
        // Predicated region
        $region97: #{tpu_custom_call.1} parent=75 // pred_check
          %p665 = pneg %p223
        $region98: #{tpu_custom_call.1} parent=75 // pred_check_branch
          %667 = sbr.rel (%p665) target = $region100
        $region99: #{tpu_custom_call.1} parent=75 // pred_region
          %668 = dma.done %s662, 16
        $region100: #{tpu_custom_call.1} parent=75 // pred_fallthru
          _
        %s669 = sand.u32 %s46, 1
        %s670 = scalar_lea.sflag [#allocation12], %s669
        %s671 = sand.u32 %s236, 1
        %s672 = scalar_lea.vmem [#allocation13], %s671
        // Predicated region
        $region101: #{tpu_custom_call.1} parent=75 // pred_check
          %p673 = pneg %p249
        $region102: #{tpu_custom_call.1} parent=75 // pred_check_branch
          %675 = sbr.rel (%p673) target = $region104
        $region103: #{tpu_custom_call.1} parent=75 // pred_region
          %676 = dma.done %s670, 16
        $region104: #{tpu_custom_call.1} parent=75 // pred_fallthru
          _
        // Predicated region
        $region105: #{tpu_custom_call.1} parent=75 // pred_check
          %p677 = pneg %p291
        $region106: #{tpu_custom_call.1} parent=75 // pred_check_branch
          %679 = sbr.rel (%p677) target = $region108
        $region107: #{tpu_custom_call.1} parent=75 // pred_region
          %680 = dma.done [#allocation15], 16
        $region108: #{tpu_custom_call.1} parent=75 // pred_fallthru
          _
        // Predicated region
        $region109: #{tpu_custom_call.1} parent=75 // pred_check
          %p681 = pneg %p354
        $region110: #{tpu_custom_call.1} parent=75 // pred_check_branch
          %683 = sbr.rel (%p681) target = $region112
        $region111: #{tpu_custom_call.1} parent=75 // pred_region
          %684 = dma.done [#allocation15], 256
        $region112: #{tpu_custom_call.1} parent=75 // pred_fallthru
          _
        %p685 = scmp.lt.s32.totalorder %s46, 1
        %s686 = scalar_select %p685, %s46, 1
        %s687 = smul.addr %s686, 8
        %s688 = scalar_lea.vmem %s0, %s687
        %p689 = pneg %p67
        %p690 = pneg %p64
        %s691 = sand.u32 %s80, 1
        %s692 = scalar_lea.sflag [#allocation3], %s691
        %s693 = sand.u32 %s80, 1
        %s694 = smul.addr %s693, 8
        %s695 = scalar_lea.vmem [#allocation2], %s694
        %p696 = pneg %p93
        %p697 = pneg %p90
        %s698 = sand.u32 %s46, 1
        %s699 = scalar_lea.sflag [#allocation6], %s698
        %s700 = sand.u32 %s106, 1
        %s701 = smul.addr %s700, 8
        %s702 = scalar_lea.vmem [#allocation5], %s701
        %p703 = pneg %p119
        %p704 = pneg %p116
        %s705 = sand.u32 %s46, 1
        %s706 = scalar_lea.sflag [#allocation6], %s705
        %s707 = sand.u32 %s132, 1
        %s708 = smul.addr %s707, 8
        %s709 = scalar_lea.vmem [#allocation7], %s708
        %p710 = pneg %p145
        %p711 = pneg %p142
        %s712 = sand.u32 %s46, 1
        %s713 = scalar_lea.sflag [#allocation9], %s712
        %s714 = sand.u32 %s158, 1
        %s715 = scalar_lea.vmem [#allocation8], %s714
        %p716 = pneg %p171
        %p717 = pneg %p168
        %s718 = sand.u32 %s46, 1
        %s719 = scalar_lea.sflag [#allocation9], %s718
        %s720 = sand.u32 %s184, 1
        %s721 = scalar_lea.vmem [#allocation10], %s720
        %p722 = pneg %p197
        %p723 = pneg %p194
        %s724 = sand.u32 %s46, 1
        %s725 = scalar_lea.sflag [#allocation12], %s724
        %s726 = sand.u32 %s210, 1
        %s727 = scalar_lea.vmem [#allocation11], %s726
        %p728 = pneg %p223
        %p729 = pneg %p220
        %s730 = sand.u32 %s46, 1
        %s731 = scalar_lea.sflag [#allocation12], %s730
        %s732 = sand.u32 %s236, 1
        %s733 = scalar_lea.vmem [#allocation13], %s732
        %p734 = pneg %p249
        %p735 = pneg %p246
        %p736 = pneg %p270
        %p737 = pneg %p267
        %p738 = pneg %p291
        %p739 = pneg %p288
        %p740 = pneg %p312
        %p741 = pneg %p309
        %p742 = pneg %p333
        %p743 = pneg %p330
        %p744 = pneg %p354
        %p745 = pneg %p351
        %p746 = pneg %p375
        %p747 = pneg %p372
        %p748 = pneg %p401
        %p749 = pneg %p398
        %s750 = sand.u32 %s388, 1
        %s751 = scalar_lea.sflag [#allocation4], %s750
        %s752 = sand.u32 %s388, 1
        %s753 = smul.addr %s752, 8
        %s754 = scalar_lea.vmem [#allocation17], %s753
        %p755 = pneg %p427
        %p756 = pneg %p424
        %s757 = sand.u32 %s414, 1
        %s758 = scalar_lea.sflag [#allocation19], %s757
        %s759 = sand.u32 %s414, 1
        %s760 = smul.addr %s759, 8
        %s761 = scalar_lea.vmem [#allocation18], %s760
        %p762 = scmp.lt.s32.totalorder %s46, 1
        %s763 = scalar_select %p762, %s46, 1
        %s764 = smul.addr %s763, 8
        %s765 = scalar_lea.vmem %s0, %s764
        %v767 = vld [vmem:[%s765] sm:$0xff]
        %v768 = vpack.c.bf16 %v767, %v767
        %v769 = vld [vmem:[%s8] sm:$0xf]
        %v770 = vld [vmem:[%s8 + $0x4] sm:$0xf]
        %v771 = vld [vmem:[%s8 + $0x8] sm:$0xf]
        %v772 = vld [vmem:[%s8 + $0xc] sm:$0xf]
        %v773 = vld [vmem:[#allocation14] sm:$0x1]
        %v775 = vlaneseq
        %v776 = vshrl.u32 %v775, 7
        %v777 = vsub.s32 0, %v776
        %v778 = vrot.slane %v773, %v777
        %v784 = vunpack.c.l.b16 %v769
        %v785 = vunpack.c.l.b16 %v770
        %v786 = vunpack.c.l.b16 %v771
        %v787 = vunpack.c.l.b16 %v772
        %v788 = vpack.c.b16 %v785, %v784
        %v789 = vpack.c.b16 %v787, %v786
        %vm792 = vcmask 261120
        %v794 = vsel %vm792, %v768, 0
        %796 = vmatprep.subr.bf16.mxu0 0
        %797 = vmatpush1.bf16.msra.mxu0 0
        %798 = vmatprep.subr.bf16.mxu0 0
        %799 = vmatpush1.bf16.msra.mxu0 0
        %800 = vmatprep.subr.bf16.mxu0 0
        %801 = vmatpush1.bf16.msra.mxu0 0
        %802 = vmatprep.subr.bf16.mxu0 0
        %803 = vmatpush1.bf16.msra.mxu0 0
        %804 = vmatprep.subr.bf16.mxu0 0
        %805 = vmatpush1.bf16.msra.mxu0 0
        %806 = vmatprep.subr.bf16.mxu0 0
        %807 = vmatpush1.bf16.msra.mxu0 0
        %808 = vmatprep.subr.bf16.mxu0 0
        %809 = vmatpush1.bf16.msra.mxu0 %v789
        %810 = vmatprep.subr.bf16.mxu0 0
        %811 = vmatpush1.bf16.msra.mxu0 %v788
        %812 = vmatprep.subr.bf16.mxu0 0
        %813 = vmatpush2.bf16.msra.mxu0 0
        %814 = vmatprep.subr.bf16.mxu0 0
        %815 = vmatpush2.bf16.msra.mxu0 0
        %816 = vmatprep.subr.bf16.mxu0 0
        %817 = vmatpush2.bf16.msra.mxu0 0
        %818 = vmatprep.subr.bf16.mxu0 0
        %819 = vmatpush2.bf16.msra.mxu0 0
        %820 = vmatprep.subr.bf16.mxu0 0
        %821 = vmatpush2.bf16.msra.mxu0 0
        %822 = vmatprep.subr.bf16.mxu0 0
        %823 = vmatpush2.bf16.msra.mxu0 0
        %824 = vmatprep.subr.bf16.mxu0 0
        %825 = vmatpush2.bf16.msra.mxu0 0
        %826 = vmatprep.subr.bf16.mxu0 0
        %827 = vmatpush2.bf16.msra.mxu0 0
        %828 = vmatprep.mubr.bf16.mxu0 0
        %829 = vmatmul.mubr.bf16.gmra.mxu0 %v794
        %v830 = vpop.f32.mrf.mxu0
        %v831 = vadd.f32 %v778, %v830
        %v832 = vpop.f32.mrf.mxu0
        %v833 = vpop.f32.mrf.mxu0
        %v834 = vpop.f32.mrf.mxu0
        %835 = vdwg.mxu0
        %v836 = vmul.f32 %v831, %v831
        %v837 = vmul.f32 %v831, %v836
        %v838 = vmul.f32 %v837, 0.044715
        %v839 = vadd.f32 %v831, %v838
        %v840 = vmul.f32 %v839, 0.7978846
        %v841 = vtanh.pop %v840
        %v842 = vadd.f32 %v841, 1.0
        %v843 = vmul.f32 %v842, 0.5
        %v844 = vmul.f32 %v831, %v843
        %v845 = vpack.c.bf16 %v844, %v844
        %v846 = vld [vmem:[%s10] sm:$0xf]
        %v847 = vld [vmem:[%s10 + $0x4] sm:$0xf]
        %v848 = vld [vmem:[%s10 + $0x8] sm:$0xf]
        %v849 = vld [vmem:[%s10 + $0xc] sm:$0xf]
        %v850 = vld [vmem:[%s11] sm:$0x1]
        %v852 = vlaneseq
        %v853 = vshrl.u32 %v852, 7
        %v854 = vsub.s32 0, %v853
        %v855 = vrot.slane %v850, %v854
        %v861 = vunpack.c.l.b16 %v846
        %v862 = vunpack.c.l.b16 %v847
        %v863 = vunpack.c.l.b16 %v848
        %v864 = vunpack.c.l.b16 %v849
        %v865 = vpack.c.b16 %v862, %v861
        %v866 = vpack.c.b16 %v864, %v863
        %v870 = vsel %vm792, %v845, 0
        %872 = vmatprep.subr.bf16.mxu0 0
        %873 = vmatpush1.bf16.msra.mxu0 0
        %874 = vmatprep.subr.bf16.mxu0 0
        %875 = vmatpush1.bf16.msra.mxu0 0
        %876 = vmatprep.subr.bf16.mxu0 0
        %877 = vmatpush1.bf16.msra.mxu0 0
        %878 = vmatprep.subr.bf16.mxu0 0
        %879 = vmatpush1.bf16.msra.mxu0 0
        %880 = vmatprep.subr.bf16.mxu0 0
        %881 = vmatpush1.bf16.msra.mxu0 0
        %882 = vmatprep.subr.bf16.mxu0 0
        %883 = vmatpush1.bf16.msra.mxu0 0
        %884 = vmatprep.subr.bf16.mxu0 0
        %885 = vmatpush1.bf16.msra.mxu0 %v866
        %886 = vmatprep.subr.bf16.mxu0 0
        %887 = vmatpush1.bf16.msra.mxu0 %v865
        %888 = vmatprep.subr.bf16.mxu0 0
        %889 = vmatpush2.bf16.msra.mxu0 0
        %890 = vmatprep.subr.bf16.mxu0 0
        %891 = vmatpush2.bf16.msra.mxu0 0
        %892 = vmatprep.subr.bf16.mxu0 0
        %893 = vmatpush2.bf16.msra.mxu0 0
        %894 = vmatprep.subr.bf16.mxu0 0
        %895 = vmatpush2.bf16.msra.mxu0 0
        %896 = vmatprep.subr.bf16.mxu0 0
        %897 = vmatpush2.bf16.msra.mxu0 0
        %898 = vmatprep.subr.bf16.mxu0 0
        %899 = vmatpush2.bf16.msra.mxu0 0
        %900 = vmatprep.subr.bf16.mxu0 0
        %901 = vmatpush2.bf16.msra.mxu0 0
        %902 = vmatprep.subr.bf16.mxu0 0
        %903 = vmatpush2.bf16.msra.mxu0 0
        %904 = vmatprep.mubr.bf16.mxu0 0
        %905 = vmatmul.mubr.bf16.gmra.mxu0 %v870
        %v906 = vpop.f32.mrf.mxu0
        %v907 = vadd.f32 %v855, %v906
        %v908 = vpop.f32.mrf.mxu0
        %v909 = vpop.f32.mrf.mxu0
        %v910 = vpop.f32.mrf.mxu0
        %911 = vdwg.mxu0
        %v912 = vld [vmem:[#allocation16] sm:$0xf]
        %v913 = vld [vmem:[#allocation16 + $0x4] sm:$0xf]
        %v914 = vld [vmem:[#allocation16 + $0x8] sm:$0xf]
        %v915 = vld [vmem:[#allocation16 + $0xc] sm:$0xf]
        %v916 = vld [vmem:[%s13] sm:$0x1]
        %v918 = vlaneseq
        %v919 = vshrl.u32 %v918, 7
        %v920 = vsub.s32 0, %v919
        %v921 = vrot.slane %v916, %v920
        %v927 = vunpack.c.l.b16 %v912
        %v928 = vunpack.c.l.b16 %v913
        %v929 = vunpack.c.l.b16 %v914
        %v930 = vunpack.c.l.b16 %v915
        %v931 = vpack.c.b16 %v928, %v927
        %v932 = vpack.c.b16 %v930, %v929
        %935 = vmatprep.subr.bf16.mxu0 0
        %936 = vmatpush1.bf16.msra.mxu0 0
        %937 = vmatprep.subr.bf16.mxu0 0
        %938 = vmatpush1.bf16.msra.mxu0 0
        %939 = vmatprep.subr.bf16.mxu0 0
        %940 = vmatpush1.bf16.msra.mxu0 0
        %941 = vmatprep.subr.bf16.mxu0 0
        %942 = vmatpush1.bf16.msra.mxu0 0
        %943 = vmatprep.subr.bf16.mxu0 0
        %944 = vmatpush1.bf16.msra.mxu0 0
        %945 = vmatprep.subr.bf16.mxu0 0
        %946 = vmatpush1.bf16.msra.mxu0 0
        %947 = vmatprep.subr.bf16.mxu0 0
        %948 = vmatpush1.bf16.msra.mxu0 %v932
        %949 = vmatprep.subr.bf16.mxu0 0
        %950 = vmatpush1.bf16.msra.mxu0 %v931
        %951 = vmatprep.subr.bf16.mxu0 0
        %952 = vmatpush2.bf16.msra.mxu0 0
        %953 = vmatprep.subr.bf16.mxu0 0
        %954 = vmatpush2.bf16.msra.mxu0 0
        %955 = vmatprep.subr.bf16.mxu0 0
        %956 = vmatpush2.bf16.msra.mxu0 0
        %957 = vmatprep.subr.bf16.mxu0 0
        %958 = vmatpush2.bf16.msra.mxu0 0
        %959 = vmatprep.subr.bf16.mxu0 0
        %960 = vmatpush2.bf16.msra.mxu0 0
        %961 = vmatprep.subr.bf16.mxu0 0
        %962 = vmatpush2.bf16.msra.mxu0 0
        %963 = vmatprep.subr.bf16.mxu0 0
        %964 = vmatpush2.bf16.msra.mxu0 0
        %965 = vmatprep.subr.bf16.mxu0 0
        %966 = vmatpush2.bf16.msra.mxu0 0
        %967 = vmatprep.mubr.bf16.mxu0 0
        %968 = vmatmul.mubr.bf16.gmra.mxu0 %v870
        %v969 = vpop.f32.mrf.mxu0
        %v970 = vadd.f32 %v921, %v969
        %v971 = vpop.f32.mrf.mxu0
        %v972 = vpop.f32.mrf.mxu0
        %v973 = vpop.f32.mrf.mxu0
        %974 = vdwg.mxu0
        %vm975 = vcmask 64512
        %v976 = vsel %vm975, %v907, 0.0
        %977 = vadd.xlane.f32.xlu0 %v976
        %v978 = vpop.xlane.xlu0 %977
        %v979 = vsel %vm792, %v970, 0.0
        %980 = vadd.xlane.f32.xlu0 %v979
        %v981 = vpop.xlane.xlu0 %980
        %v982 = vadd.f32 %v978, %v981
        %v983 = vmul.f32 %v907, %v907
        %v984 = vsel %vm975, %v983, 0.0
        %985 = vadd.xlane.f32.xlu0 %v984
        %v986 = vpop.xlane.xlu0 %985
        %v987 = vmul.f32 %v970, %v970
        %v988 = vsel %vm792, %v987, 0.0
        %989 = vadd.xlane.f32.xlu0 %v988
        %v990 = vpop.xlane.xlu0 %989
        %v991 = vadd.f32 %v986, %v990
        %v992 = vmul.f32 %v982, 0.025
        %v993 = vmul.f32 %v991, 0.025
        %v994 = vmul.f32 %v992, %v992
        %v995 = vsub.f32 %v993, %v994
        %v996 = vadd.f32 %v995, 1e-05
        %v997 = vrsqrt.pop %v996
        %v998 = vld [vmem:[%s622] sm:$0xff]
        %v999 = vsub.f32 %v907, %v992
        %v1000 = vmul.f32 %v999, %v997
        %v1001 = vld [vmem:[%s656] sm:$0x1]
        %v1002 = vadd.f32 %v1001, 1.0
        %v1004 = vlaneseq
        %v1005 = vshrl.u32 %v1004, 7
        %v1006 = vsub.s32 0, %v1005
        %v1007 = vrot.slane %v1002, %v1006
        %v1009 = vmul.f32 %v1000, %v1007
        %v1010 = vadd.f32 %v998, %v1009
        %v1011 = vld [vmem:[%s648] sm:$0x1]
        %v1013 = vlaneseq
        %v1014 = vshrl.u32 %v1013, 7
        %v1015 = vsub.s32 0, %v1014
        %v1016 = vrot.slane %v1011, %v1015
        %v1018 = vadd.f32 %v1010, %v1016
        %1019 = vst.msk [vmem:[%s754] sm:$0xff] %vm975, %v1018
        %v1020 = vsub.f32 %v970, %v992
        %v1021 = vmul.f32 %v1020, %v997
        %v1022 = vld [vmem:[%s672] sm:$0x1]
        %v1023 = vadd.f32 %v1022, 1.0
        %v1025 = vlaneseq
        %v1026 = vshrl.u32 %v1025, 7
        %v1027 = vsub.s32 0, %v1026
        %v1028 = vrot.slane %v1023, %v1027
        %v1030 = vmul.f32 %v1021, %v1028
        %v1031 = vld [vmem:[%s664] sm:$0x1]
        %v1033 = vlaneseq
        %v1034 = vshrl.u32 %v1033, 7
        %v1035 = vsub.s32 0, %v1034
        %v1036 = vrot.slane %v1031, %v1035
        %v1038 = vadd.f32 %v1030, %v1036
        %v1039 = vld [vmem:[%s631] sm:$0xff]
        %v1040 = vadd.f32 %v1038, %v1039
        %v1041 = vld [vmem:[%s640] sm:$0xff]
        %1042 = vxpose.xlu0.b32.start [1/16] %v1040, 128
        %1043 = vxpose.xlu0.b32.cont [2/16] 0.0, 128
        %1044 = vxpose.xlu0.b32.cont [3/16] 0.0, 128
        %1045 = vxpose.xlu0.b32.cont [4/16] 0.0, 128
        %1046 = vxpose.xlu0.b32.cont [5/16] 0.0, 128
        %1047 = vxpose.xlu0.b32.cont [6/16] 0.0, 128
        %1048 = vxpose.xlu0.b32.cont [7/16] 0.0, 128
        %1049 = vxpose.xlu0.b32.cont [8/16] 0.0, 128
        %1050 = vxpose.xlu0.b32.cont [9/16] 0.0, 128
        %1051 = vxpose.xlu0.b32.cont [10/16] 0.0, 128
        %1052 = vxpose.xlu0.b32.cont [11/16] 0.0, 128
        %1053 = vxpose.xlu0.b32.cont [12/16] 0.0, 128
        %1054 = vxpose.xlu0.b32.cont [13/16] 0.0, 128
        %1055 = vxpose.xlu0.b32.cont [14/16] 0.0, 128
        %1056 = vxpose.xlu0.b32.cont [15/16] 0.0, 128
        %1057 = vxpose.xlu0.b32.end [16/16] 0.0, 128
        %v1058 = vpop.trf.xlu0
        %v1059 = vpop.trf.xlu0
        %v1060 = vpop.trf.xlu0
        %v1061 = vpop.trf.xlu0
        %v1062 = vpop.trf.xlu0
        %v1063 = vpop.trf.xlu0
        %v1064 = vpop.trf.xlu0
        %v1065 = vpop.trf.xlu0
        %v1066 = vpop.trf.xlu0
        %v1067 = vpop.trf.xlu0
        %v1068 = vpop.trf.xlu0
        %v1069 = vpop.trf.xlu0
        %v1070 = vpop.trf.xlu0
        %v1071 = vpop.trf.xlu0
        %v1072 = vpop.trf.xlu0
        %v1073 = vpop.trf.xlu0
        %v1074 = vadd.f32 %v1040, %v1058
        %v1075 = vmul.f32 %v1041, %v1074
        %1076 = vst.msk [vmem:[%s761] sm:$0xff] %vm975, %v1075
        %1078 = vrot.lane.b32.xlu0 %v1040, 120
        %v1079 = vpop.permute.xlu0 %1078
        %1081 = vxpose.xlu0.b32.start [1/16] %v1079, 128
        %1082 = vxpose.xlu0.b32.cont [2/16] 0.0, 128
        %1083 = vxpose.xlu0.b32.cont [3/16] 0.0, 128
        %1084 = vxpose.xlu0.b32.cont [4/16] 0.0, 128
        %1085 = vxpose.xlu0.b32.cont [5/16] 0.0, 128
        %1086 = vxpose.xlu0.b32.cont [6/16] 0.0, 128
        %1087 = vxpose.xlu0.b32.cont [7/16] 0.0, 128
        %1088 = vxpose.xlu0.b32.cont [8/16] 0.0, 128
        %1089 = vxpose.xlu0.b32.cont [9/16] 0.0, 128
        %1090 = vxpose.xlu0.b32.cont [10/16] 0.0, 128
        %1091 = vxpose.xlu0.b32.cont [11/16] 0.0, 128
        %1092 = vxpose.xlu0.b32.cont [12/16] 0.0, 128
        %1093 = vxpose.xlu0.b32.cont [13/16] 0.0, 128
        %1094 = vxpose.xlu0.b32.cont [14/16] 0.0, 128
        %1095 = vxpose.xlu0.b32.cont [15/16] 0.0, 128
        %1096 = vxpose.xlu0.b32.end [16/16] 0.0, 128
        %v1097 = vpop.trf.xlu0
        %v1098 = vpop.trf.xlu0
        %v1099 = vpop.trf.xlu0
        %v1100 = vpop.trf.xlu0
        %v1101 = vpop.trf.xlu0
        %v1102 = vpop.trf.xlu0
        %v1103 = vpop.trf.xlu0
        %v1104 = vpop.trf.xlu0
        %v1105 = vpop.trf.xlu0
        %v1106 = vpop.trf.xlu0
        %v1107 = vpop.trf.xlu0
        %v1108 = vpop.trf.xlu0
        %v1109 = vpop.trf.xlu0
        %v1110 = vpop.trf.xlu0
        %v1111 = vpop.trf.xlu0
        %v1112 = vpop.trf.xlu0
        %1114 = vrot.lane.b32.xlu0 %v1097, 8
        %v1115 = vpop.permute.xlu0 %1114
        %v1117 = vadd.f32 %v1040, %v1115
        %1119 = vrot.lane.b32.xlu0 %v1117, 120
        %v1120 = vpop.permute.xlu0 %1119
        %v1122 = vmul.f32 %v1041, %v1120
        %1124 = vrot.lane.b32.xlu0 %v1122, 8
        %v1125 = vpop.permute.xlu0 %1124
        %vm1127 = vcmask 130112
        %1128 = vst.msk [vmem:[%s761] sm:$0xff] %vm1127, %v1125
        %1129 = vrot.lane.b32.xlu0 %v1040, 112
        %v1130 = vpop.permute.xlu0 %1129
        %1132 = vxpose.xlu0.b32.start [1/16] %v1130, 128
        %1133 = vxpose.xlu0.b32.cont [2/16] 0.0, 128
        %1134 = vxpose.xlu0.b32.cont [3/16] 0.0, 128
        %1135 = vxpose.xlu0.b32.cont [4/16] 0.0, 128
        %1136 = vxpose.xlu0.b32.cont [5/16] 0.0, 128
        %1137 = vxpose.xlu0.b32.cont [6/16] 0.0, 128
        %1138 = vxpose.xlu0.b32.cont [7/16] 0.0, 128
        %1139 = vxpose.xlu0.b32.cont [8/16] 0.0, 128
        %1140 = vxpose.xlu0.b32.cont [9/16] 0.0, 128
        %1141 = vxpose.xlu0.b32.cont [10/16] 0.0, 128
        %1142 = vxpose.xlu0.b32.cont [11/16] 0.0, 128
        %1143 = vxpose.xlu0.b32.cont [12/16] 0.0, 128
        %1144 = vxpose.xlu0.b32.cont [13/16] 0.0, 128
        %1145 = vxpose.xlu0.b32.cont [14/16] 0.0, 128
        %1146 = vxpose.xlu0.b32.cont [15/16] 0.0, 128
        %1147 = vxpose.xlu0.b32.end [16/16] 0.0, 128
        %v1148 = vpop.trf.xlu0
        %v1149 = vpop.trf.xlu0
        %v1150 = vpop.trf.xlu0
        %v1151 = vpop.trf.xlu0
        %v1152 = vpop.trf.xlu0
        %v1153 = vpop.trf.xlu0
        %v1154 = vpop.trf.xlu0
        %v1155 = vpop.trf.xlu0
        %v1156 = vpop.trf.xlu0
        %v1157 = vpop.trf.xlu0
        %v1158 = vpop.trf.xlu0
        %v1159 = vpop.trf.xlu0
        %v1160 = vpop.trf.xlu0
        %v1161 = vpop.trf.xlu0
        %v1162 = vpop.trf.xlu0
        %v1163 = vpop.trf.xlu0
        %1165 = vrot.lane.b32.xlu0 %v1148, 16
        %v1166 = vpop.permute.xlu0 %1165
        %v1168 = vadd.f32 %v1040, %v1166
        %1170 = vrot.lane.b32.xlu0 %v1168, 112
        %v1171 = vpop.permute.xlu0 %1170
        %v1173 = vmul.f32 %v1041, %v1171
        %1175 = vrot.lane.b32.xlu0 %v1173, 16
        %v1176 = vpop.permute.xlu0 %1175
        %vm1178 = vcmask 195712
        %1179 = vst.msk [vmem:[%s761] sm:$0xff] %vm1178, %v1176
        %1180 = vrot.lane.b32.xlu0 %v1040, 104
        %v1181 = vpop.permute.xlu0 %1180
        %1183 = vxpose.xlu0.b32.start [1/16] %v1181, 128
        %1184 = vxpose.xlu0.b32.cont [2/16] 0.0, 128
        %1185 = vxpose.xlu0.b32.cont [3/16] 0.0, 128
        %1186 = vxpose.xlu0.b32.cont [4/16] 0.0, 128
        %1187 = vxpose.xlu0.b32.cont [5/16] 0.0, 128
        %1188 = vxpose.xlu0.b32.cont [6/16] 0.0, 128
        %1189 = vxpose.xlu0.b32.cont [7/16] 0.0, 128
        %1190 = vxpose.xlu0.b32.cont [8/16] 0.0, 128
        %1191 = vxpose.xlu0.b32.cont [9/16] 0.0, 128
        %1192 = vxpose.xlu0.b32.cont [10/16] 0.0, 128
        %1193 = vxpose.xlu0.b32.cont [11/16] 0.0, 128
        %1194 = vxpose.xlu0.b32.cont [12/16] 0.0, 128
        %1195 = vxpose.xlu0.b32.cont [13/16] 0.0, 128
        %1196 = vxpose.xlu0.b32.cont [14/16] 0.0, 128
        %1197 = vxpose.xlu0.b32.cont [15/16] 0.0, 128
        %1198 = vxpose.xlu0.b32.end [16/16] 0.0, 128
        %v1199 = vpop.trf.xlu0
        %v1200 = vpop.trf.xlu0
        %v1201 = vpop.trf.xlu0
        %v1202 = vpop.trf.xlu0
        %v1203 = vpop.trf.xlu0
        %v1204 = vpop.trf.xlu0
        %v1205 = vpop.trf.xlu0
        %v1206 = vpop.trf.xlu0
        %v1207 = vpop.trf.xlu0
        %v1208 = vpop.trf.xlu0
        %v1209 = vpop.trf.xlu0
        %v1210 = vpop.trf.xlu0
        %v1211 = vpop.trf.xlu0
        %v1212 = vpop.trf.xlu0
        %v1213 = vpop.trf.xlu0
        %v1214 = vpop.trf.xlu0
        %1216 = vrot.lane.b32.xlu0 %v1199, 24
        %v1217 = vpop.permute.xlu0 %1216
        %v1219 = vadd.f32 %v1040, %v1217
        %1221 = vrot.lane.b32.xlu0 %v1219, 104
        %v1222 = vpop.permute.xlu0 %1221
        %v1224 = vmul.f32 %v1041, %v1222
        %1226 = vrot.lane.b32.xlu0 %v1224, 24
        %v1227 = vpop.permute.xlu0 %1226
        %vm1229 = vcmask 261312
        %1230 = vst.msk [vmem:[%s761] sm:$0xff] %vm1229, %v1227
        %s1231 = sand.u32 %s388, 1
        %s1232 = scalar_lea.sflag [#allocation4], %s1231
        %s1233 = sand.u32 %s388, 1
        %s1234 = smul.addr %s1233, 8
        %s1235 = scalar_lea.vmem [#allocation17], %s1234
        %s1236 = sand.u32 %s414, 1
        %s1237 = scalar_lea.sflag [#allocation19], %s1236
        %s1238 = sand.u32 %s414, 1
        %s1239 = smul.addr %s1238, 8
        %s1240 = scalar_lea.vmem [#allocation18], %s1239
        // Predicated region
        $region113: #{tpu_custom_call.1} parent=75 // pred_check
          %p1241 = pneg %p398
        $region114: #{tpu_custom_call.1} parent=75 // pred_check_branch
          %1243 = sbr.rel (%p1241) target = $region116
        $region115: #{tpu_custom_call.1} parent=75 // pred_region
          %s1245 = ssub.s32 128, 128
          %1246 = vsyncadd %s1232, %s1245
          %s1247 = smul.addr %s46, 128
          %s1248 = scalar_lea.hbm %s14, %s1247
          %s1250 = sshll.u32 %s1235, 4
          %s1251 = int_to_ptr.vmem [resolvable:$true] %s1250
          %1253 = dma.vmem_to_hbm [thread:$0]  %s1251, 128, %s1248, %s1232
        $region116: #{tpu_custom_call.1} parent=75 // pred_fallthru
          _
        // Predicated region
        $region117: #{tpu_custom_call.1} parent=75 // pred_check
          %p1254 = pneg %p424
        $region118: #{tpu_custom_call.1} parent=75 // pred_check_branch
          %1256 = sbr.rel (%p1254) target = $region120
        $region119: #{tpu_custom_call.1} parent=75 // pred_region
          %s1258 = ssub.s32 128, 128
          %1259 = vsyncadd %s1237, %s1258
          %s1260 = smul.addr %s46, 128
          %s1261 = scalar_lea.hbm %s15, %s1260
          %s1263 = sshll.u32 %s1240, 4
          %s1264 = int_to_ptr.vmem [resolvable:$true] %s1263
          %1266 = dma.vmem_to_hbm [thread:$0]  %s1264, 128, %s1261, %s1237
        $region120: #{tpu_custom_call.1} parent=75 // pred_fallthru
          _
      $region76: #{tpu_custom_call.1} parent=5 // pred_fallthru
        _
      %p1267 = scmp.le.s32.totalorder 2, %s41
      // Predicated region
      $region121: #{tpu_custom_call.1} parent=5 // pred_check
        %p1268 = pneg %p1267
      $region122: #{tpu_custom_call.1} parent=5 // pred_check_branch
        %1270 = sbr.rel (%p1268) target = $region124
      $region123: #{tpu_custom_call.1} parent=5 // pred_region
        %s1271 = ssub.s32 %s41, 2
        // Predicated region
        $region125: #{tpu_custom_call.1} parent=123 // pred_check
          %p1272 = pneg %p404
        $region126: #{tpu_custom_call.1} parent=123 // pred_check_branch
          %1274 = sbr.rel (%p1272) target = $region128
        $region127: #{tpu_custom_call.1} parent=123 // pred_region
          %s1275 = sand.u32 %s389, 1
          %s1276 = scalar_lea.sflag [#allocation4], %s1275
          %s1277 = sand.u32 %s389, 1
          %s1278 = smul.addr %s1277, 8
          %s1279 = scalar_lea.vmem [#allocation17], %s1278
          %1280 = dma.done %s1276, 128
        $region128: #{tpu_custom_call.1} parent=123 // pred_fallthru
          _
        // Predicated region
        $region129: #{tpu_custom_call.1} parent=123 // pred_check
          %p1281 = pneg %p430
        $region130: #{tpu_custom_call.1} parent=123 // pred_check_branch
          %1283 = sbr.rel (%p1281) target = $region132
        $region131: #{tpu_custom_call.1} parent=123 // pred_region
          %s1284 = sand.u32 %s415, 1
          %s1285 = scalar_lea.sflag [#allocation19], %s1284
          %s1286 = sand.u32 %s415, 1
          %s1287 = smul.addr %s1286, 8
          %s1288 = scalar_lea.vmem [#allocation18], %s1287
          %1289 = dma.done %s1285, 128
        $region132: #{tpu_custom_call.1} parent=123 // pred_fallthru
          _
      $region124: #{tpu_custom_call.1} parent=5 // pred_fallthru
        _
    $region6: #{tpu_custom_call.1} parent=1 // loop_footer
      %s45 = sadd.s32 1, %s41
    $region7: #{tpu_custom_call.1} parent=1 // loop_footer_branch
      %40 = sbr.rel target = $region3
    $region8: #{tpu_custom_call.1} parent=1 // loop_exit
      _
    %1290 = vsyncpa [#allocation3], 1
    %s1291 = scalar_lea.sflag [#allocation3], 1
    %1292 = vsyncpa %s1291, 1
    %1293 = vsyncpa [#allocation6], 1
    %s1294 = scalar_lea.sflag [#allocation6], 1
    %1295 = vsyncpa %s1294, 1
    %1296 = vsyncpa [#allocation9], 1
    %s1297 = scalar_lea.sflag [#allocation9], 1
    %1298 = vsyncpa %s1297, 1
    %1299 = vsyncpa [#allocation12], 1
    %s1300 = scalar_lea.sflag [#allocation12], 1
    %1301 = vsyncpa %s1300, 1
    %1302 = vsyncpa [#allocation15], 1
    %1303 = vsyncpa [#allocation4], 1
    %s1304 = scalar_lea.sflag [#allocation4], 1
    %1305 = vsyncpa %s1304, 1
    %1306 = vsyncpa [#allocation19], 1
    %s1307 = scalar_lea.sflag [#allocation19], 1
    %1308 = vsyncpa %s1307, 1

</llo_original>
